<compile_context>
chip_gen: v7x
topology: tpu7x:2x2x1
jax: 0.10.0
libtpu: 0.0.40
codegen_flags: <defaults>
</compile_context>

<pallas_src>
from collections import defaultdict

import jax
import jax.numpy as jnp
from jax.experimental import pallas as pl
from jax.experimental.pallas import tpu as pltpu

HIDDEN = 32
DROPOUT_P = 0.5  # TODO(synk): dropout implemented for inference only (identity); training-mode RNG masks not emitted.

NODE_TYPES = {"n1": dict(num=16, feat=16), "n2": dict(num=8, feat=8)}
MESSAGE_TYPES = [("n1", "e1", "n1"), ("n2", "e2", "n1"), ("n1", "e3", "n2")]
LABEL_MESSAGE_TYPES = [("n1", "el1", "n1"), ("n1", "el2", "n1")]
NUM_EDGES = {("n1", "e1", "n1"): 32, ("n2", "e2", "n1"): 24, ("n1", "e3", "n2"): 24}
NUM_LABEL_EDGES = 24
NUM_LABEL_MTS = len(LABEL_MESSAGE_TYPES)
N1_NUM = NODE_TYPES["n1"]["num"]


def _round_up(n, m=8):
    return -(-n // m) * m


# ----------------------------- fused Pallas kernel -----------------------------

def make_fused_kernel(layout):
    """layout maps (layer, message_type, name) -> (row_offset, rows) into the packed param slab."""

    def kernel(eli_ref, x1_ref, x2_ref, a0_ref, a1_ref, a2_ref, p_ref, out_ref):
        def param(layer, mt, name):
            off, rows = layout[(layer, mt, name)]
            return p_ref[off:off + rows, :]          # static, 8-aligned sublane slice

        relu = lambda v: jnp.maximum(v, 0.0)

        # relu(dropout(x)) with dropout == identity in eval; applied ONCE per node type.
        h = {"n1": relu(x1_ref[...]), "n2": relu(x2_ref[...])}
        adj = {MESSAGE_TYPES[0]: a0_ref[...],
               MESSAGE_TYPES[1]: a1_ref[...],
               MESSAGE_TYPES[2]: a2_ref[...]}

        def hetero_conv(hx, layer):
            out = {}
            for mt in MESSAGE_TYPES:
                src, _, dst = mt
                # mean aggregation over neighbours == row-normalized dense adjacency matmul
                aggr = jnp.dot(adj[mt], hx[src], preferred_element_type=jnp.float32)
                emb = (jnp.dot(aggr, param(layer, mt, "wn"),
                               preferred_element_type=jnp.float32)
                       + jnp.dot(hx[dst], param(layer, mt, "ws"),
                                 preferred_element_type=jnp.float32)
                       + param(layer, mt, "b"))
                out[dst] = emb if dst not in out else out[dst] + emb  # HeteroConv 'add'
            return out

        x = hetero_conv(h, 0)
        x = {k: relu(v) for k, v in x.items()}
        x = hetero_conv(x, 1)

        # link scores: Gram matrix + one-hot index selection, all on MXU/VPU; lane-major output.
        xn1 = x["n1"]                                                       # (N1, HIDDEN)
        gram = jax.lax.dot_general(xn1, xn1, (((1,), (1,)), ((), ())),
                                   preferred_element_type=jnp.float32)      # (N1, N1)

        eli = eli_ref[...]                                                  # (2*num_mts, E) int32
        node_iota = jax.lax.broadcasted_iota(jnp.int32, (N1_NUM, NUM_LABEL_EDGES), 0)
        rows = []
        for m in range(NUM_LABEL_MTS):
            i0 = eli[2 * m:2 * m + 1, :]                                    # (1, E)
            i1 = eli[2 * m + 1:2 * m + 2, :]                                # (1, E)
            sel0 = (node_iota == i0).astype(jnp.float32)                    # (N1, E)
            sel1 = (node_iota == i1).astype(jnp.float32)                    # (N1, E)
            t = jnp.dot(gram, sel1, preferred_element_type=jnp.float32)     # t[n,e] = gram[n, i1[e]]
            rows.append(jnp.sum(sel0 * t, axis=0, keepdims=True))           # (1, E): gram[i0[e], i1[e]]
        out_ref[...] = jnp.concatenate(rows, axis=0)                        # (num_mts, E)

    return kernel


def hetero_net_forward(node_feature, adj_norms, eli_stacked, param_slab, layout):
    scores = pl.pallas_call(
        make_fused_kernel(layout),
        out_shape=jax.ShapeDtypeStruct((NUM_LABEL_MTS, NUM_LABEL_EDGES), jnp.float32),
        in_specs=[pl.BlockSpec(memory_space=pltpu.MemorySpace.VMEM)] * 7,
        out_specs=pl.BlockSpec(memory_space=pltpu.MemorySpace.VMEM),
    )(eli_stacked, node_feature["n1"], node_feature["n2"],
      adj_norms[MESSAGE_TYPES[0]], adj_norms[MESSAGE_TYPES[1]], adj_norms[MESSAGE_TYPES[2]],
      param_slab)
    return {mt: scores[i] for i, mt in enumerate(LABEL_MESSAGE_TYPES)}


# ----------------------------- glue (params / graph) -----------------------------

def init_linear(key, fan_in, fan_out):
    k = 1.0 / (float(fan_in) ** 0.5)
    kw, kb = jax.random.split(key)
    w = jax.random.uniform(kw, (fan_in, fan_out), jnp.float32, -k, k)
    b = jax.random.uniform(kb, (1, fan_out), jnp.float32, -k, k)
    return w, b


def init_sage_params(key, in_neigh, in_self, out):
    k1, k2, k3 = jax.random.split(key, 3)
    w_neigh, b_neigh = init_linear(k1, in_neigh, out)
    w_self, b_self = init_linear(k2, in_self, out)
    w_upd, b_upd = init_linear(k3, 2 * out, out)
    return dict(w_neigh=w_neigh, b_neigh=b_neigh, w_self=w_self, b_self=b_self,
                w_upd_n=w_upd[:out], w_upd_s=w_upd[out:], b_upd=b_upd)


def fold_and_pack_params(params1, params2):
    """Fold lin_neigh/lin_self into lin_update (exact: no nonlinearity between them) and pack
    all fused weights/biases into one lane-dense (R, HIDDEN) slab with 8-row aligned chunks."""
    chunks, layout, off = [], {}, 0

    def add(key, arr):
        nonlocal off
        r = arr.shape[0]
        rpad = _round_up(r)
        chunks.append(jnp.zeros((rpad, HIDDEN), jnp.float32).at[:r, :].set(arr))
        layout[key] = (off, r)
        off += rpad

    for layer, params in enumerate((params1, params2)):
        for mt in MESSAGE_TYPES:
            p = params[mt]
            wn = p["w_neigh"] @ p["w_upd_n"]
            ws = p["w_self"] @ p["w_upd_s"]
            b = p["b_neigh"] @ p["w_upd_n"] + p["b_self"] @ p["w_upd_s"] + p["b_upd"]
            add((layer, mt, "wn"), wn)
            add((layer, mt, "ws"), ws)
            add((layer, mt, "b"), b)

    return jnp.concatenate(chunks, axis=0), layout


def build_adj_norm(edge_index, n_src, n_dst):
    src, dst = edge_index[0], edge_index[1]
    adj = jnp.zeros((n_dst, n_src), jnp.float32).at[dst, src].add(1.0)
    deg = jnp.clip(jnp.sum(adj, axis=1, keepdims=True), 1.0, None)
    return adj / deg  # zero-degree rows stay 0 (matches scatter-mean behaviour)


# ----------------------------- pure-jnp reference (unfused params) -----------------------------

def _sage_ref(adj, xn, xs, p):
    xn, xs = jnp.maximum(xn, 0.0), jnp.maximum(xs, 0.0)
    a = (adj @ xn) @ p["w_neigh"] + p["b_neigh"]
    s = xs @ p["w_self"] + p["b_self"]
    return a @ p["w_upd_n"] + s @ p["w_upd_s"] + p["b_upd"]


def reference_forward(node_feature, adj_norms, edge_label_index, params1, params2):
    def layer(x, params):
        per_dst = defaultdict(list)
        for mt in MESSAGE_TYPES:
            src, _, dst = mt
            per_dst[dst].append(_sage_ref(adj_norms[mt], x[src], x[dst], params[mt]))
        return {d: sum(embs[1:], embs[0]) for d, embs in per_dst.items()}

    x = layer(node_feature, params1)
    x = layer(x, params2)
    pred = {}
    for mt, eli in edge_label_index.items():
        pred[mt] = jnp.sum(x["n1"][eli[0]] * x["n1"][eli[1]], axis=-1)
    return pred


# ----------------------------- main -----------------------------

if __name__ == "__main__":
    root = jax.random.PRNGKey(0)
    k_feat, k_edge, k_label, k_p1, k_p2 = jax.random.split(root, 5)

    # node features
    node_feature = {}
    for i, (nt, cfg) in enumerate(NODE_TYPES.items()):
        node_feature[nt] = jax.random.normal(jax.random.fold_in(k_feat, i),
                                             (cfg["num"], cfg["feat"]), jnp.float32)

    # message-passing edges -> normalized adjacency per message type
    adj_norms = {}
    for i, mt in enumerate(MESSAGE_TYPES):
        src_t, _, dst_t = mt
        ke = jax.random.fold_in(k_edge, i)
        src = jax.random.randint(jax.random.fold_in(ke, 0), (NUM_EDGES[mt],), 0, NODE_TYPES[src_t]["num"])
        dst = jax.random.randint(jax.random.fold_in(ke, 1), (NUM_EDGES[mt],), 0, NODE_TYPES[dst_t]["num"])
        edge_index = jnp.stack([src, dst]).astype(jnp.int32)
        adj_norms[mt] = build_adj_norm(edge_index, NODE_TYPES[src_t]["num"], NODE_TYPES[dst_t]["num"])

    # supervision edges (edge_label_index), all over 'n1' nodes as in the reference forward
    edge_label_index = {}
    for i, mt in enumerate(LABEL_MESSAGE_TYPES):
        kl = jax.random.fold_in(k_label, i)
        edge_label_index[mt] = jax.random.randint(kl, (2, NUM_LABEL_EDGES), 0,
                                                  NODE_TYPES["n1"]["num"]).astype(jnp.int32)
    # stacked lane-major index block: rows [mt0_src, mt0_dst, mt1_src, mt1_dst]
    eli_stacked = jnp.concatenate([edge_label_index[mt] for mt in LABEL_MESSAGE_TYPES], axis=0)

    # parameters: conv1 maps raw feature dims -> HIDDEN, conv2 maps HIDDEN -> HIDDEN
    params1, params2 = {}, {}
    for i, mt in enumerate(MESSAGE_TYPES):
        src_t, _, dst_t = mt
        params1[mt] = init_sage_params(jax.random.fold_in(k_p1, i),
                                       NODE_TYPES[src_t]["feat"], NODE_TYPES[dst_t]["feat"], HIDDEN)
        params2[mt] = init_sage_params(jax.random.fold_in(k_p2, i), HIDDEN, HIDDEN, HIDDEN)

    # one-time parameter folding + packing into a single lane-dense slab
    param_slab, layout = fold_and_pack_params(params1, params2)

    pred = hetero_net_forward(node_feature, adj_norms, eli_stacked, param_slab, layout)
    pred = jax.block_until_ready(pred)

    ref = reference_forward(node_feature, adj_norms, edge_label_index, params1, params2)
    for mt in LABEL_MESSAGE_TYPES:
        assert pred[mt].shape == (NUM_LABEL_EDGES,)
        assert jnp.allclose(pred[mt], ref[mt], atol=1e-4, rtol=1e-4), f"mismatch for {mt}"

    print("KERNEL_OK")
</pallas_src>

<mosaic_0001>
module attributes {stable_mosaic.version = 11 : i64} {
  func.func @kernel(%arg0: memref<4x24xi32, #tpu.memory_space<vmem>>, %arg1: memref<16x16xf32, #tpu.memory_space<vmem>>, %arg2: memref<8x8xf32, #tpu.memory_space<vmem>>, %arg3: memref<16x16xf32, #tpu.memory_space<vmem>>, %arg4: memref<16x8xf32, #tpu.memory_space<vmem>>, %arg5: memref<8x16xf32, #tpu.memory_space<vmem>>, %arg6: memref<320x32xf32, #tpu.memory_space<vmem>>, %arg7: memref<2x24xf32, #tpu.memory_space<vmem>>) attributes {dimension_semantics = [], scalar_prefetch = 0 : i64, scratch_operands = 0 : i64, tpu.core_type = #tpu.core_type<tc>} {
    %c0 = arith.constant 0 : index
    %c0_0 = arith.constant 0 : index
    %0 = vector.load %arg1[%c0, %c0_0] : memref<16x16xf32, #tpu.memory_space<vmem>>, vector<16x16xf32>
    %cst = arith.constant 0.000000e+00 : f32
    %1 = vector.broadcast %cst : f32 to vector<16x16xf32>
    %2 = arith.maximumf %0, %1 : vector<16x16xf32>
    %c0_1 = arith.constant 0 : index
    %c0_2 = arith.constant 0 : index
    %3 = vector.load %arg2[%c0_1, %c0_2] : memref<8x8xf32, #tpu.memory_space<vmem>>, vector<8x8xf32>
    %cst_3 = arith.constant 0.000000e+00 : f32
    %4 = vector.broadcast %cst_3 : f32 to vector<8x8xf32>
    %5 = arith.maximumf %3, %4 : vector<8x8xf32>
    %c0_4 = arith.constant 0 : index
    %c0_5 = arith.constant 0 : index
    %6 = vector.load %arg3[%c0_4, %c0_5] : memref<16x16xf32, #tpu.memory_space<vmem>>, vector<16x16xf32>
    %c0_6 = arith.constant 0 : index
    %c0_7 = arith.constant 0 : index
    %7 = vector.load %arg4[%c0_6, %c0_7] : memref<16x8xf32, #tpu.memory_space<vmem>>, vector<16x8xf32>
    %c0_8 = arith.constant 0 : index
    %c0_9 = arith.constant 0 : index
    %8 = vector.load %arg5[%c0_8, %c0_9] : memref<8x16xf32, #tpu.memory_space<vmem>>, vector<8x16xf32>
    %cst_10 = arith.constant dense<0.000000e+00> : vector<16x16xf32>
    %9 = tpu.matmul %6, %2, %cst_10 {dimension_numbers = #tpu.dot_dimension_numbers<[1], [0], [0], [1], [0, 0, 1, 1], [], []>} : vector<16x16xf32>, vector<16x16xf32>, vector<16x16xf32> -> vector<16x16xf32>
    %c0_11 = arith.constant 0 : index
    %c0_12 = arith.constant 0 : index
    %10 = vector.load %arg6[%c0_11, %c0_12] : memref<320x32xf32, #tpu.memory_space<vmem>>, vector<16x32xf32>
    %cst_13 = arith.constant dense<0.000000e+00> : vector<16x32xf32>
    %11 = tpu.matmul %9, %10, %cst_13 {dimension_numbers = #tpu.dot_dimension_numbers<[1], [0], [0], [1], [0, 0, 1, 1], [], []>} : vector<16x16xf32>, vector<16x32xf32>, vector<16x32xf32> -> vector<16x32xf32>
    %c16 = arith.constant 16 : index
    %c0_14 = arith.constant 0 : index
    %12 = vector.load %arg6[%c16, %c0_14] : memref<320x32xf32, #tpu.memory_space<vmem>>, vector<16x32xf32>
    %cst_15 = arith.constant dense<0.000000e+00> : vector<16x32xf32>
    %13 = tpu.matmul %2, %12, %cst_15 {dimension_numbers = #tpu.dot_dimension_numbers<[1], [0], [0], [1], [0, 0, 1, 1], [], []>} : vector<16x16xf32>, vector<16x32xf32>, vector<16x32xf32> -> vector<16x32xf32>
    %14 = arith.addf %11, %13 : vector<16x32xf32>
    %c32 = arith.constant 32 : index
    %c0_16 = arith.constant 0 : index
    %15 = vector.load %arg6[%c32, %c0_16] : memref<320x32xf32, #tpu.memory_space<vmem>>, vector<1x32xf32>
    %16 = vector.broadcast %15 : vector<1x32xf32> to vector<16x32xf32>
    %17 = arith.addf %14, %16 : vector<16x32xf32>
    %cst_17 = arith.constant dense<0.000000e+00> : vector<16x8xf32>
    %18 = tpu.matmul %7, %5, %cst_17 {dimension_numbers = #tpu.dot_dimension_numbers<[1], [0], [0], [1], [0, 0, 1, 1], [], []>} : vector<16x8xf32>, vector<8x8xf32>, vector<16x8xf32> -> vector<16x8xf32>
    %c40 = arith.constant 40 : index
    %c0_18 = arith.constant 0 : index
    %19 = vector.load %arg6[%c40, %c0_18] : memref<320x32xf32, #tpu.memory_space<vmem>>, vector<8x32xf32>
    %cst_19 = arith.constant dense<0.000000e+00> : vector<16x32xf32>
    %20 = tpu.matmul %18, %19, %cst_19 {dimension_numbers = #tpu.dot_dimension_numbers<[1], [0], [0], [1], [0, 0, 1, 1], [], []>} : vector<16x8xf32>, vector<8x32xf32>, vector<16x32xf32> -> vector<16x32xf32>
    %c48 = arith.constant 48 : index
    %c0_20 = arith.constant 0 : index
    %21 = vector.load %arg6[%c48, %c0_20] : memref<320x32xf32, #tpu.memory_space<vmem>>, vector<16x32xf32>
    %cst_21 = arith.constant dense<0.000000e+00> : vector<16x32xf32>
    %22 = tpu.matmul %2, %21, %cst_21 {dimension_numbers = #tpu.dot_dimension_numbers<[1], [0], [0], [1], [0, 0, 1, 1], [], []>} : vector<16x16xf32>, vector<16x32xf32>, vector<16x32xf32> -> vector<16x32xf32>
    %23 = arith.addf %20, %22 : vector<16x32xf32>
    %c64 = arith.constant 64 : index
    %c0_22 = arith.constant 0 : index
    %24 = vector.load %arg6[%c64, %c0_22] : memref<320x32xf32, #tpu.memory_space<vmem>>, vector<1x32xf32>
    %25 = vector.broadcast %24 : vector<1x32xf32> to vector<16x32xf32>
    %26 = arith.addf %23, %25 : vector<16x32xf32>
    %27 = arith.addf %17, %26 : vector<16x32xf32>
    %cst_23 = arith.constant dense<0.000000e+00> : vector<8x16xf32>
    %28 = tpu.matmul %8, %2, %cst_23 {dimension_numbers = #tpu.dot_dimension_numbers<[1], [0], [0], [1], [0, 0, 1, 1], [], []>} : vector<8x16xf32>, vector<16x16xf32>, vector<8x16xf32> -> vector<8x16xf32>
    %c72 = arith.constant 72 : index
    %c0_24 = arith.constant 0 : index
    %29 = vector.load %arg6[%c72, %c0_24] : memref<320x32xf32, #tpu.memory_space<vmem>>, vector<16x32xf32>
    %cst_25 = arith.constant dense<0.000000e+00> : vector<8x32xf32>
    %30 = tpu.matmul %28, %29, %cst_25 {dimension_numbers = #tpu.dot_dimension_numbers<[1], [0], [0], [1], [0, 0, 1, 1], [], []>} : vector<8x16xf32>, vector<16x32xf32>, vector<8x32xf32> -> vector<8x32xf32>
    %c88 = arith.constant 88 : index
    %c0_26 = arith.constant 0 : index
    %31 = vector.load %arg6[%c88, %c0_26] : memref<320x32xf32, #tpu.memory_space<vmem>>, vector<8x32xf32>
    %cst_27 = arith.constant dense<0.000000e+00> : vector<8x32xf32>
    %32 = tpu.matmul %5, %31, %cst_27 {dimension_numbers = #tpu.dot_dimension_numbers<[1], [0], [0], [1], [0, 0, 1, 1], [], []>} : vector<8x8xf32>, vector<8x32xf32>, vector<8x32xf32> -> vector<8x32xf32>
    %33 = arith.addf %30, %32 : vector<8x32xf32>
    %c96 = arith.constant 96 : index
    %c0_28 = arith.constant 0 : index
    %34 = vector.load %arg6[%c96, %c0_28] : memref<320x32xf32, #tpu.memory_space<vmem>>, vector<1x32xf32>
    %35 = vector.broadcast %34 : vector<1x32xf32> to vector<8x32xf32>
    %36 = arith.addf %33, %35 : vector<8x32xf32>
    %cst_29 = arith.constant 0.000000e+00 : f32
    %37 = vector.broadcast %cst_29 : f32 to vector<16x32xf32>
    %38 = arith.maximumf %27, %37 : vector<16x32xf32>
    %cst_30 = arith.constant 0.000000e+00 : f32
    %39 = vector.broadcast %cst_30 : f32 to vector<8x32xf32>
    %40 = arith.maximumf %36, %39 : vector<8x32xf32>
    %cst_31 = arith.constant dense<0.000000e+00> : vector<16x32xf32>
    %41 = tpu.matmul %6, %38, %cst_31 {dimension_numbers = #tpu.dot_dimension_numbers<[1], [0], [0], [1], [0, 0, 1, 1], [], []>} : vector<16x16xf32>, vector<16x32xf32>, vector<16x32xf32> -> vector<16x32xf32>
    %c104 = arith.constant 104 : index
    %c0_32 = arith.constant 0 : index
    %42 = vector.load %arg6[%c104, %c0_32] : memref<320x32xf32, #tpu.memory_space<vmem>>, vector<32x32xf32>
    %cst_33 = arith.constant dense<0.000000e+00> : vector<16x32xf32>
    %43 = tpu.matmul %41, %42, %cst_33 {dimension_numbers = #tpu.dot_dimension_numbers<[1], [0], [0], [1], [0, 0, 1, 1], [], []>} : vector<16x32xf32>, vector<32x32xf32>, vector<16x32xf32> -> vector<16x32xf32>
    %c136 = arith.constant 136 : index
    %c0_34 = arith.constant 0 : index
    %44 = vector.load %arg6[%c136, %c0_34] : memref<320x32xf32, #tpu.memory_space<vmem>>, vector<32x32xf32>
    %cst_35 = arith.constant dense<0.000000e+00> : vector<16x32xf32>
    %45 = tpu.matmul %38, %44, %cst_35 {dimension_numbers = #tpu.dot_dimension_numbers<[1], [0], [0], [1], [0, 0, 1, 1], [], []>} : vector<16x32xf32>, vector<32x32xf32>, vector<16x32xf32> -> vector<16x32xf32>
    %46 = arith.addf %43, %45 : vector<16x32xf32>
    %c168 = arith.constant 168 : index
    %c0_36 = arith.constant 0 : index
    %47 = vector.load %arg6[%c168, %c0_36] : memref<320x32xf32, #tpu.memory_space<vmem>>, vector<1x32xf32>
    %48 = vector.broadcast %47 : vector<1x32xf32> to vector<16x32xf32>
    %49 = arith.addf %46, %48 : vector<16x32xf32>
    %cst_37 = arith.constant dense<0.000000e+00> : vector<16x32xf32>
    %50 = tpu.matmul %7, %40, %cst_37 {dimension_numbers = #tpu.dot_dimension_numbers<[1], [0], [0], [1], [0, 0, 1, 1], [], []>} : vector<16x8xf32>, vector<8x32xf32>, vector<16x32xf32> -> vector<16x32xf32>
    %c176 = arith.constant 176 : index
    %c0_38 = arith.constant 0 : index
    %51 = vector.load %arg6[%c176, %c0_38] : memref<320x32xf32, #tpu.memory_space<vmem>>, vector<32x32xf32>
    %cst_39 = arith.constant dense<0.000000e+00> : vector<16x32xf32>
    %52 = tpu.matmul %50, %51, %cst_39 {dimension_numbers = #tpu.dot_dimension_numbers<[1], [0], [0], [1], [0, 0, 1, 1], [], []>} : vector<16x32xf32>, vector<32x32xf32>, vector<16x32xf32> -> vector<16x32xf32>
    %c208 = arith.constant 208 : index
    %c0_40 = arith.constant 0 : index
    %53 = vector.load %arg6[%c208, %c0_40] : memref<320x32xf32, #tpu.memory_space<vmem>>, vector<32x32xf32>
    %cst_41 = arith.constant dense<0.000000e+00> : vector<16x32xf32>
    %54 = tpu.matmul %38, %53, %cst_41 {dimension_numbers = #tpu.dot_dimension_numbers<[1], [0], [0], [1], [0, 0, 1, 1], [], []>} : vector<16x32xf32>, vector<32x32xf32>, vector<16x32xf32> -> vector<16x32xf32>
    %55 = arith.addf %52, %54 : vector<16x32xf32>
    %c240 = arith.constant 240 : index
    %c0_42 = arith.constant 0 : index
    %56 = vector.load %arg6[%c240, %c0_42] : memref<320x32xf32, #tpu.memory_space<vmem>>, vector<1x32xf32>
    %57 = vector.broadcast %56 : vector<1x32xf32> to vector<16x32xf32>
    %58 = arith.addf %55, %57 : vector<16x32xf32>
    %59 = arith.addf %49, %58 : vector<16x32xf32>
    %cst_43 = arith.constant dense<0.000000e+00> : vector<16x16xf32>
    %60 = tpu.matmul %59, %59, %cst_43 {dimension_numbers = #tpu.dot_dimension_numbers<[1], [1], [0], [0], [0, 0, 1, 0], [], []>} : vector<16x32xf32>, vector<16x32xf32>, vector<16x16xf32> -> vector<16x16xf32>
    %c0_44 = arith.constant 0 : index
    %c0_45 = arith.constant 0 : index
    %61 = vector.load %arg0[%c0_44, %c0_45] : memref<4x24xi32, #tpu.memory_space<vmem>>, vector<4x24xi32>
    %62 = tpu.iota {dimensions = array<i32: 0>} : vector<16x24xi32>
    %63 = vector.extract_strided_slice %61 {offsets = [0, 0], sizes = [1, 24], strides = [1, 1]} : vector<4x24xi32> to vector<1x24xi32>
    %64 = vector.extract_strided_slice %61 {offsets = [1, 0], sizes = [1, 24], strides = [1, 1]} : vector<4x24xi32> to vector<1x24xi32>
    %65 = vector.broadcast %63 : vector<1x24xi32> to vector<16x24xi32>
    %66 = arith.cmpi eq, %62, %65 : vector<16x24xi32>
    %67 = arith.extui %66 : vector<16x24xi1> to vector<16x24xi32>
    %68 = arith.sitofp %67 : vector<16x24xi32> to vector<16x24xf32>
    %69 = vector.broadcast %64 : vector<1x24xi32> to vector<16x24xi32>
    %70 = arith.cmpi eq, %62, %69 : vector<16x24xi32>
    %71 = arith.extui %70 : vector<16x24xi1> to vector<16x24xi32>
    %72 = arith.sitofp %71 : vector<16x24xi32> to vector<16x24xf32>
    %cst_46 = arith.constant dense<0.000000e+00> : vector<16x24xf32>
    %73 = tpu.matmul %60, %72, %cst_46 {dimension_numbers = #tpu.dot_dimension_numbers<[1], [0], [0], [1], [0, 0, 1, 1], [], []>} : vector<16x16xf32>, vector<16x24xf32>, vector<16x24xf32> -> vector<16x24xf32>
    %74 = arith.mulf %68, %73 : vector<16x24xf32>
    %cst_47 = arith.constant dense<0.000000e+00> : vector<24xf32>
    %75 = vector.multi_reduction <add>, %74, %cst_47 [0] : vector<16x24xf32> to vector<24xf32>
    %76 = vector.shape_cast %75 : vector<24xf32> to vector<1x24xf32>
    %77 = vector.extract_strided_slice %61 {offsets = [2, 0], sizes = [1, 24], strides = [1, 1]} : vector<4x24xi32> to vector<1x24xi32>
    %78 = vector.extract_strided_slice %61 {offsets = [3, 0], sizes = [1, 24], strides = [1, 1]} : vector<4x24xi32> to vector<1x24xi32>
    %79 = vector.broadcast %77 : vector<1x24xi32> to vector<16x24xi32>
    %80 = arith.cmpi eq, %62, %79 : vector<16x24xi32>
    %81 = arith.extui %80 : vector<16x24xi1> to vector<16x24xi32>
    %82 = arith.sitofp %81 : vector<16x24xi32> to vector<16x24xf32>
    %83 = vector.broadcast %78 : vector<1x24xi32> to vector<16x24xi32>
    %84 = arith.cmpi eq, %62, %83 : vector<16x24xi32>
    %85 = arith.extui %84 : vector<16x24xi1> to vector<16x24xi32>
    %86 = arith.sitofp %85 : vector<16x24xi32> to vector<16x24xf32>
    %cst_48 = arith.constant dense<0.000000e+00> : vector<16x24xf32>
    %87 = tpu.matmul %60, %86, %cst_48 {dimension_numbers = #tpu.dot_dimension_numbers<[1], [0], [0], [1], [0, 0, 1, 1], [], []>} : vector<16x16xf32>, vector<16x24xf32>, vector<16x24xf32> -> vector<16x24xf32>
    %88 = arith.mulf %82, %87 : vector<16x24xf32>
    %cst_49 = arith.constant dense<0.000000e+00> : vector<24xf32>
    %89 = vector.multi_reduction <add>, %88, %cst_49 [0] : vector<16x24xf32> to vector<24xf32>
    %90 = vector.shape_cast %89 : vector<24xf32> to vector<1x24xf32>
    %91 = tpu.concatenate %76, %90 in 0 : vector<1x24xf32>, vector<1x24xf32> -> vector<2x24xf32>
    %c0_50 = arith.constant 0 : index
    %c0_51 = arith.constant 0 : index
    %92 = vector.load %arg7[%c0_50, %c0_51] : memref<2x24xf32, #tpu.memory_space<vmem>>, vector<2x24xf32>
    tpu.vector_store %arg7[%c0_50, %c0_51], %91 {strides = array<i32>} : memref<2x24xf32, #tpu.memory_space<vmem>>, vector<2x24xf32>,
    return
  }
}

</mosaic_0001>

<llo_original>
// kernel: tpu_custom_call.1
$region0: #{tpu_custom_call.1}
  #allocation0 [shape = 'u32[]', space=smem, size = 0x4, offset = 0x4, fixed_abs, tag = 'smem constant byte address 0x4 - core index']
  #allocation1 [shape = 'u32[144,128]{1,0:T(1,128)}', space=vmem, size = 0x12000, scoped, tag = 'internal scratch']
  %s0 = inlined_call_operand.vmem [shape: s32[4,24], index: 0, kind: input, shape index: {}]
  %s1 = inlined_call_operand.vmem [shape: f32[16,16], index: 1, kind: input, shape index: {}]
  %s2 = inlined_call_operand.vmem [shape: f32[8,8], index: 2, kind: input, shape index: {}]
  %s3 = inlined_call_operand.vmem [shape: f32[16,16], index: 3, kind: input, shape index: {}]
  %s4 = inlined_call_operand.vmem [shape: f32[16,8], index: 4, kind: input, shape index: {}]
  %s5 = inlined_call_operand.vmem [shape: f32[8,16], index: 5, kind: input, shape index: {}]
  %s6 = inlined_call_operand.vmem [shape: f32[320,32], index: 6, kind: input, shape index: {}]
  %s7 = inlined_call_operand.hbm [shape: f32[2,24], index: 7, kind: output, shape index: {}]
  %s8 = sld [smem:[#allocation0]]
  $region38: #{tpu_custom_call.1} parent=0
    _
  %s10 = ssub.s32 1, %s8
  %s11 = scalar_select 0, %s10, %s8
  $region1: #{tpu_custom_call.1} parent=0
    #allocation2 [shape = 'u8[1024]{0}', space=vmem, size = 0x400, scoped, tag = 'output window, operand 0, single buffered']
    #allocation3 [shape = 's32[1]{0}', space=sflag, size = 0x4, scoped, tag = 'scoped memory for tpu_custom_call.1']
    %12 = vsyncpa [#allocation3], 0
    // Predicated region
    $region2: #{tpu_custom_call.1} parent=1 // pred_check
      _
    $region3: #{tpu_custom_call.1} parent=1 // pred_check_branch
      %14 = sbr.rel (0) target = $region5
    $region4: #{tpu_custom_call.1} parent=1 // pred_region
      _
    $region5: #{tpu_custom_call.1} parent=1 // pred_fallthru
      _
    // Predicated region
    $region6: #{tpu_custom_call.1} parent=1 // pred_check
      _
    $region7: #{tpu_custom_call.1} parent=1 // pred_check_branch
      %16 = sbr.rel (0) target = $region9
    $region8: #{tpu_custom_call.1} parent=1 // pred_region
      _
    $region9: #{tpu_custom_call.1} parent=1 // pred_fallthru
      _
    // Predicated region
    $region10: #{tpu_custom_call.1} parent=1 // pred_check
      _
    $region11: #{tpu_custom_call.1} parent=1 // pred_check_branch
      %18 = sbr.rel (0) target = $region13
    $region12: #{tpu_custom_call.1} parent=1 // pred_region
      _
    $region13: #{tpu_custom_call.1} parent=1 // pred_fallthru
      _
    // Predicated region
    $region14: #{tpu_custom_call.1} parent=1 // pred_check
      _
    $region15: #{tpu_custom_call.1} parent=1 // pred_check_branch
      %20 = sbr.rel (0) target = $region17
    $region16: #{tpu_custom_call.1} parent=1 // pred_region
      _
    $region17: #{tpu_custom_call.1} parent=1 // pred_fallthru
      _
    // Predicated region
    $region18: #{tpu_custom_call.1} parent=1 // pred_check
      _
    $region19: #{tpu_custom_call.1} parent=1 // pred_check_branch
      %22 = sbr.rel (0) target = $region21
    $region20: #{tpu_custom_call.1} parent=1 // pred_region
      _
    $region21: #{tpu_custom_call.1} parent=1 // pred_fallthru
      _
    // Predicated region
    $region22: #{tpu_custom_call.1} parent=1 // pred_check
      _
    $region23: #{tpu_custom_call.1} parent=1 // pred_check_branch
      %24 = sbr.rel (0) target = $region25
    $region24: #{tpu_custom_call.1} parent=1 // pred_region
      _
    $region25: #{tpu_custom_call.1} parent=1 // pred_fallthru
      _
    // Predicated region
    $region26: #{tpu_custom_call.1} parent=1 // pred_check
      _
    $region27: #{tpu_custom_call.1} parent=1 // pred_check_branch
      %26 = sbr.rel (0) target = $region29
    $region28: #{tpu_custom_call.1} parent=1 // pred_region
      _
    $region29: #{tpu_custom_call.1} parent=1 // pred_fallthru
      _
    %v27 = vld [vmem:[%s1] sm:$0xff]
    %v28 = vld [vmem:[%s1 + $0x8] sm:$0xff]
    %v29 = vmax.f32 %v27, 0.0
    %v30 = vmax.f32 %v28, 0.0
    %v31 = vld [vmem:[%s2] sm:$0xff]
    %v32 = vmax.f32 %v31, 0.0
    %v33 = vld [vmem:[%s3] sm:$0xff]
    %v34 = vld [vmem:[%s3 + $0x8] sm:$0xff]
    %v35 = vld [vmem:[%s4] sm:$0xff]
    %v36 = vld [vmem:[%s4 + $0x8] sm:$0xff]
    %v37 = vld [vmem:[%s5] sm:$0xff]
    %vm38 = vcmask 130048
    %v40 = vsel %vm38, %v33, 0
    %v43 = vsel %vm38, %v34, 0
    %45 = vmatprep.subr.mxu0 0.0
    %46 = vmatpush1.msra.mxu0 %v29
    %47 = vmatprep.subr.mxu0 0.0
    %48 = vmatpush1.msra.mxu0 %v30
    %49 = vmatprep.subr.mxu0 0.0
    %50 = vmatpush1.msra.mxu0 0.0
    %51 = vmatprep.subr.mxu0 0.0
    %52 = vmatpush1.msra.mxu0 0.0
    %53 = vmatprep.subr.mxu0 0.0
    %54 = vmatpush1.msra.mxu0 0.0
    %55 = vmatprep.subr.mxu0 0.0
    %56 = vmatpush1.msra.mxu0 0.0
    %57 = vmatprep.subr.mxu0 0.0
    %58 = vmatpush1.msra.mxu0 0.0
    %59 = vmatprep.subr.mxu0 0.0
    %60 = vmatpush1.msra.mxu0 0.0
    %61 = vmatprep.subr.mxu0 0.0
    %62 = vmatpush1.msra.mxu0 0.0
    %63 = vmatprep.subr.mxu0 0.0
    %64 = vmatpush1.msra.mxu0 0.0
    %65 = vmatprep.subr.mxu0 0.0
    %66 = vmatpush1.msra.mxu0 0.0
    %67 = vmatprep.subr.mxu0 0.0
    %68 = vmatpush1.msra.mxu0 0.0
    %69 = vmatprep.subr.mxu0 0.0
    %70 = vmatpush1.msra.mxu0 0.0
    %71 = vmatprep.subr.mxu0 0.0
    %72 = vmatpush1.msra.mxu0 0.0
    %73 = vmatprep.subr.mxu0 0.0
    %74 = vmatpush1.msra.mxu0 0.0
    %75 = vmatprep.subr.mxu0 0.0
    %76 = vmatpush1.msra.mxu0 0.0
    %77 = vmatprep.subr.mxu0 0.0
    %78 = vmatpush1.msra.mxu0 0.0
    %79 = vmatprep.subr.mxu0 0.0
    %80 = vmatpush1.msra.mxu0 0.0
    %81 = vmatprep.subr.mxu0 0.0
    %82 = vmatpush1.msra.mxu0 0.0
    %83 = vmatprep.subr.mxu0 0.0
    %84 = vmatpush1.msra.mxu0 0.0
    %85 = vmatprep.subr.mxu0 0.0
    %86 = vmatpush1.msra.mxu0 0.0
    %87 = vmatprep.subr.mxu0 0.0
    %88 = vmatpush1.msra.mxu0 0.0
    %89 = vmatprep.subr.mxu0 0.0
    %90 = vmatpush1.msra.mxu0 0.0
    %91 = vmatprep.subr.mxu0 0.0
    %92 = vmatpush1.msra.mxu0 0.0
    %93 = vmatprep.subr.mxu0 0.0
    %94 = vmatpush1.msra.mxu0 0.0
    %95 = vmatprep.subr.mxu0 0.0
    %96 = vmatpush1.msra.mxu0 0.0
    %97 = vmatprep.subr.mxu0 0.0
    %98 = vmatpush1.msra.mxu0 0.0
    %99 = vmatprep.subr.mxu0 0.0
    %100 = vmatpush1.msra.mxu0 0.0
    %101 = vmatprep.subr.mxu0 0.0
    %102 = vmatpush1.msra.mxu0 0.0
    %103 = vmatprep.subr.mxu0 0.0
    %104 = vmatpush1.msra.mxu0 0.0
    %105 = vmatprep.subr.mxu0 0.0
    %106 = vmatpush1.msra.mxu0 0.0
    %107 = vmatprep.subr.mxu0 0.0
    %108 = vmatpush1.msra.mxu0 0.0
    %109 = vmatprep.mubr.f32.mxu0 0.0
    %110 = vmatmul.mubr.f32.gmra.mrb[0].mxu0 %v40
    %v111 = vpop.f32.mrb[0].mxu0
    %v112 = vadd.f32 0.0, %v111
    %v113 = vpop.f32.mrb[0].mxu0
    %114 = vmatprep.mubr.f32.mxu0 0.0
    %115 = vmatmul.mubr.f32.gmra.mrb[0].mxu0 %v43
    %v116 = vpop.f32.mrb[0].mxu0
    %v117 = vadd.f32 0.0, %v116
    %v118 = vpop.f32.mrb[0].mxu0
    %119 = vdwg.mxu0
    %v120 = vld [vmem:[%s6] sm:$0xff]
    %v121 = vld [vmem:[%s6 + $0x8] sm:$0xff]
    %v122 = vld [vmem:[%s6 + $0x10] sm:$0xff]
    %v123 = vld [vmem:[%s6 + $0x18] sm:$0xff]
    %v125 = vsel %vm38, %v29, 0
    %v128 = vsel %vm38, %v30, 0
    %130 = vmatprep.subr.mxu0 0.0
    %131 = vmatpush1.msra.mxu0 %v122
    %132 = vmatprep.subr.mxu0 0.0
    %133 = vmatpush1.msra.mxu0 %v123
    %134 = vmatprep.subr.mxu0 0.0
    %135 = vmatpush1.msra.mxu0 0.0
    %136 = vmatprep.subr.mxu0 0.0
    %137 = vmatpush1.msra.mxu0 0.0
    %138 = vmatprep.subr.mxu0 0.0
    %139 = vmatpush1.msra.mxu0 0.0
    %140 = vmatprep.subr.mxu0 0.0
    %141 = vmatpush1.msra.mxu0 0.0
    %142 = vmatprep.subr.mxu0 0.0
    %143 = vmatpush1.msra.mxu0 0.0
    %144 = vmatprep.subr.mxu0 0.0
    %145 = vmatpush1.msra.mxu0 0.0
    %146 = vmatprep.subr.mxu0 0.0
    %147 = vmatpush1.msra.mxu0 0.0
    %148 = vmatprep.subr.mxu0 0.0
    %149 = vmatpush1.msra.mxu0 0.0
    %150 = vmatprep.subr.mxu0 0.0
    %151 = vmatpush1.msra.mxu0 0.0
    %152 = vmatprep.subr.mxu0 0.0
    %153 = vmatpush1.msra.mxu0 0.0
    %154 = vmatprep.subr.mxu0 0.0
    %155 = vmatpush1.msra.mxu0 0.0
    %156 = vmatprep.subr.mxu0 0.0
    %157 = vmatpush1.msra.mxu0 0.0
    %158 = vmatprep.subr.mxu0 0.0
    %159 = vmatpush1.msra.mxu0 0.0
    %160 = vmatprep.subr.mxu0 0.0
    %161 = vmatpush1.msra.mxu0 0.0
    %162 = vmatprep.subr.mxu0 0.0
    %163 = vmatpush1.msra.mxu0 0.0
    %164 = vmatprep.subr.mxu0 0.0
    %165 = vmatpush1.msra.mxu0 0.0
    %166 = vmatprep.subr.mxu0 0.0
    %167 = vmatpush1.msra.mxu0 0.0
    %168 = vmatprep.subr.mxu0 0.0
    %169 = vmatpush1.msra.mxu0 0.0
    %170 = vmatprep.subr.mxu0 0.0
    %171 = vmatpush1.msra.mxu0 0.0
    %172 = vmatprep.subr.mxu0 0.0
    %173 = vmatpush1.msra.mxu0 0.0
    %174 = vmatprep.subr.mxu0 0.0
    %175 = vmatpush1.msra.mxu0 0.0
    %176 = vmatprep.subr.mxu0 0.0
    %177 = vmatpush1.msra.mxu0 0.0
    %178 = vmatprep.subr.mxu0 0.0
    %179 = vmatpush1.msra.mxu0 0.0
    %180 = vmatprep.subr.mxu0 0.0
    %181 = vmatpush1.msra.mxu0 0.0
    %182 = vmatprep.subr.mxu0 0.0
    %183 = vmatpush1.msra.mxu0 0.0
    %184 = vmatprep.subr.mxu0 0.0
    %185 = vmatpush1.msra.mxu0 0.0
    %186 = vmatprep.subr.mxu0 0.0
    %187 = vmatpush1.msra.mxu0 0.0
    %188 = vmatprep.subr.mxu0 0.0
    %189 = vmatpush1.msra.mxu0 0.0
    %190 = vmatprep.subr.mxu0 0.0
    %191 = vmatpush1.msra.mxu0 0.0
    %192 = vmatprep.subr.mxu0 0.0
    %193 = vmatpush1.msra.mxu0 0.0
    %194 = vmatprep.mubr.f32.mxu0 0.0
    %195 = vmatmul.mubr.f32.gmra.mrb[0].mxu0 %v125
    %v196 = vpop.f32.mrb[0].mxu0
    %v197 = vadd.f32 0.0, %v196
    %v198 = vpop.f32.mrb[0].mxu0
    %199 = vmatprep.mubr.f32.mxu0 0.0
    %200 = vmatmul.mubr.f32.gmra.mrb[0].mxu0 %v128
    %v201 = vpop.f32.mrb[0].mxu0
    %v202 = vadd.f32 0.0, %v201
    %v203 = vpop.f32.mrb[0].mxu0
    %204 = vdwg.mxu0
    %v206 = vsel %vm38, %v112, 0
    %v209 = vsel %vm38, %v117, 0
    %211 = vmatprep.subr.mxu0 0.0
    %212 = vmatpush1.msra.mxu0 %v120
    %213 = vmatprep.subr.mxu0 0.0
    %214 = vmatpush1.msra.mxu0 %v121
    %215 = vmatprep.subr.mxu0 0.0
    %216 = vmatpush1.msra.mxu0 0.0
    %217 = vmatprep.subr.mxu0 0.0
    %218 = vmatpush1.msra.mxu0 0.0
    %219 = vmatprep.subr.mxu0 0.0
    %220 = vmatpush1.msra.mxu0 0.0
    %221 = vmatprep.subr.mxu0 0.0
    %222 = vmatpush1.msra.mxu0 0.0
    %223 = vmatprep.subr.mxu0 0.0
    %224 = vmatpush1.msra.mxu0 0.0
    %225 = vmatprep.subr.mxu0 0.0
    %226 = vmatpush1.msra.mxu0 0.0
    %227 = vmatprep.subr.mxu0 0.0
    %228 = vmatpush1.msra.mxu0 0.0
    %229 = vmatprep.subr.mxu0 0.0
    %230 = vmatpush1.msra.mxu0 0.0
    %231 = vmatprep.subr.mxu0 0.0
    %232 = vmatpush1.msra.mxu0 0.0
    %233 = vmatprep.subr.mxu0 0.0
    %234 = vmatpush1.msra.mxu0 0.0
    %235 = vmatprep.subr.mxu0 0.0
    %236 = vmatpush1.msra.mxu0 0.0
    %237 = vmatprep.subr.mxu0 0.0
    %238 = vmatpush1.msra.mxu0 0.0
    %239 = vmatprep.subr.mxu0 0.0
    %240 = vmatpush1.msra.mxu0 0.0
    %241 = vmatprep.subr.mxu0 0.0
    %242 = vmatpush1.msra.mxu0 0.0
    %243 = vmatprep.subr.mxu0 0.0
    %244 = vmatpush1.msra.mxu0 0.0
    %245 = vmatprep.subr.mxu0 0.0
    %246 = vmatpush1.msra.mxu0 0.0
    %247 = vmatprep.subr.mxu0 0.0
    %248 = vmatpush1.msra.mxu0 0.0
    %249 = vmatprep.subr.mxu0 0.0
    %250 = vmatpush1.msra.mxu0 0.0
    %251 = vmatprep.subr.mxu0 0.0
    %252 = vmatpush1.msra.mxu0 0.0
    %253 = vmatprep.subr.mxu0 0.0
    %254 = vmatpush1.msra.mxu0 0.0
    %255 = vmatprep.subr.mxu0 0.0
    %256 = vmatpush1.msra.mxu0 0.0
    %257 = vmatprep.subr.mxu0 0.0
    %258 = vmatpush1.msra.mxu0 0.0
    %259 = vmatprep.subr.mxu0 0.0
    %260 = vmatpush1.msra.mxu0 0.0
    %261 = vmatprep.subr.mxu0 0.0
    %262 = vmatpush1.msra.mxu0 0.0
    %263 = vmatprep.subr.mxu0 0.0
    %264 = vmatpush1.msra.mxu0 0.0
    %265 = vmatprep.subr.mxu0 0.0
    %266 = vmatpush1.msra.mxu0 0.0
    %267 = vmatprep.subr.mxu0 0.0
    %268 = vmatpush1.msra.mxu0 0.0
    %269 = vmatprep.subr.mxu0 0.0
    %270 = vmatpush1.msra.mxu0 0.0
    %271 = vmatprep.subr.mxu0 0.0
    %272 = vmatpush1.msra.mxu0 0.0
    %273 = vmatprep.subr.mxu0 0.0
    %274 = vmatpush1.msra.mxu0 0.0
    %275 = vmatprep.mubr.f32.mxu0 0.0
    %276 = vmatmul.mubr.f32.gmra.mrb[0].mxu0 %v206
    %v277 = vpop.f32.mrb[0].mxu0
    %v278 = vadd.f32 %v197, %v277
    %v279 = vpop.f32.mrb[0].mxu0
    %280 = vmatprep.mubr.f32.mxu0 0.0
    %281 = vmatmul.mubr.f32.gmra.mrb[0].mxu0 %v209
    %v282 = vpop.f32.mrb[0].mxu0
    %v283 = vadd.f32 %v202, %v282
    %v284 = vpop.f32.mrb[0].mxu0
    %285 = vdwg.mxu0
    %v286 = vld [vmem:[%s6 + $0x20] sm:$0x1]
    %v287 = vlaneseq
    %v288 = vshrl.u32 %v287, 7
    %v289 = vsub.s32 0, %v288
    %v290 = vrot.slane %v286, %v289
    %v291 = vadd.f32 %v278, %v290
    %v292 = vadd.f32 %v283, %v290
    %vm293 = vcmask 64512
    %v295 = vsel %vm293, %v35, 0
    %v298 = vsel %vm293, %v36, 0
    %300 = vmatprep.subr.mxu0 0.0
    %301 = vmatpush1.msra.mxu0 %v32
    %302 = vmatprep.subr.mxu0 0.0
    %303 = vmatpush1.msra.mxu0 0.0
    %304 = vmatprep.subr.mxu0 0.0
    %305 = vmatpush1.msra.mxu0 0.0
    %306 = vmatprep.subr.mxu0 0.0
    %307 = vmatpush1.msra.mxu0 0.0
    %308 = vmatprep.subr.mxu0 0.0
    %309 = vmatpush1.msra.mxu0 0.0
    %310 = vmatprep.subr.mxu0 0.0
    %311 = vmatpush1.msra.mxu0 0.0
    %312 = vmatprep.subr.mxu0 0.0
    %313 = vmatpush1.msra.mxu0 0.0
    %314 = vmatprep.subr.mxu0 0.0
    %315 = vmatpush1.msra.mxu0 0.0
    %316 = vmatprep.subr.mxu0 0.0
    %317 = vmatpush1.msra.mxu0 0.0
    %318 = vmatprep.subr.mxu0 0.0
    %319 = vmatpush1.msra.mxu0 0.0
    %320 = vmatprep.subr.mxu0 0.0
    %321 = vmatpush1.msra.mxu0 0.0
    %322 = vmatprep.subr.mxu0 0.0
    %323 = vmatpush1.msra.mxu0 0.0
    %324 = vmatprep.subr.mxu0 0.0
    %325 = vmatpush1.msra.mxu0 0.0
    %326 = vmatprep.subr.mxu0 0.0
    %327 = vmatpush1.msra.mxu0 0.0
    %328 = vmatprep.subr.mxu0 0.0
    %329 = vmatpush1.msra.mxu0 0.0
    %330 = vmatprep.subr.mxu0 0.0
    %331 = vmatpush1.msra.mxu0 0.0
    %332 = vmatprep.subr.mxu0 0.0
    %333 = vmatpush1.msra.mxu0 0.0
    %334 = vmatprep.subr.mxu0 0.0
    %335 = vmatpush1.msra.mxu0 0.0
    %336 = vmatprep.subr.mxu0 0.0
    %337 = vmatpush1.msra.mxu0 0.0
    %338 = vmatprep.subr.mxu0 0.0
    %339 = vmatpush1.msra.mxu0 0.0
    %340 = vmatprep.subr.mxu0 0.0
    %341 = vmatpush1.msra.mxu0 0.0
    %342 = vmatprep.subr.mxu0 0.0
    %343 = vmatpush1.msra.mxu0 0.0
    %344 = vmatprep.subr.mxu0 0.0
    %345 = vmatpush1.msra.mxu0 0.0
    %346 = vmatprep.subr.mxu0 0.0
    %347 = vmatpush1.msra.mxu0 0.0
    %348 = vmatprep.subr.mxu0 0.0
    %349 = vmatpush1.msra.mxu0 0.0
    %350 = vmatprep.subr.mxu0 0.0
    %351 = vmatpush1.msra.mxu0 0.0
    %352 = vmatprep.subr.mxu0 0.0
    %353 = vmatpush1.msra.mxu0 0.0
    %354 = vmatprep.subr.mxu0 0.0
    %355 = vmatpush1.msra.mxu0 0.0
    %356 = vmatprep.subr.mxu0 0.0
    %357 = vmatpush1.msra.mxu0 0.0
    %358 = vmatprep.subr.mxu0 0.0
    %359 = vmatpush1.msra.mxu0 0.0
    %360 = vmatprep.subr.mxu0 0.0
    %361 = vmatpush1.msra.mxu0 0.0
    %362 = vmatprep.subr.mxu0 0.0
    %363 = vmatpush1.msra.mxu0 0.0
    %364 = vmatprep.mubr.f32.mxu0 0.0
    %365 = vmatmul.mubr.f32.gmra.mrb[0].mxu0 %v295
    %v366 = vpop.f32.mrb[0].mxu0
    %v367 = vadd.f32 0.0, %v366
    %v368 = vpop.f32.mrb[0].mxu0
    %369 = vmatprep.mubr.f32.mxu0 0.0
    %370 = vmatmul.mubr.f32.gmra.mrb[0].mxu0 %v298
    %v371 = vpop.f32.mrb[0].mxu0
    %v372 = vadd.f32 0.0, %v371
    %v373 = vpop.f32.mrb[0].mxu0
    %374 = vdwg.mxu0
    %v375 = vld [vmem:[%s6 + $0x28] sm:$0xff]
    %v376 = vld [vmem:[%s6 + $0x30] sm:$0xff]
    %v377 = vld [vmem:[%s6 + $0x38] sm:$0xff]
    %378 = vmatprep.subr.mxu0 0.0
    %379 = vmatpush1.msra.mxu0 %v376
    %380 = vmatprep.subr.mxu0 0.0
    %381 = vmatpush1.msra.mxu0 %v377
    %382 = vmatprep.subr.mxu0 0.0
    %383 = vmatpush1.msra.mxu0 0.0
    %384 = vmatprep.subr.mxu0 0.0
    %385 = vmatpush1.msra.mxu0 0.0
    %386 = vmatprep.subr.mxu0 0.0
    %387 = vmatpush1.msra.mxu0 0.0
    %388 = vmatprep.subr.mxu0 0.0
    %389 = vmatpush1.msra.mxu0 0.0
    %390 = vmatprep.subr.mxu0 0.0
    %391 = vmatpush1.msra.mxu0 0.0
    %392 = vmatprep.subr.mxu0 0.0
    %393 = vmatpush1.msra.mxu0 0.0
    %394 = vmatprep.subr.mxu0 0.0
    %395 = vmatpush1.msra.mxu0 0.0
    %396 = vmatprep.subr.mxu0 0.0
    %397 = vmatpush1.msra.mxu0 0.0
    %398 = vmatprep.subr.mxu0 0.0
    %399 = vmatpush1.msra.mxu0 0.0
    %400 = vmatprep.subr.mxu0 0.0
    %401 = vmatpush1.msra.mxu0 0.0
    %402 = vmatprep.subr.mxu0 0.0
    %403 = vmatpush1.msra.mxu0 0.0
    %404 = vmatprep.subr.mxu0 0.0
    %405 = vmatpush1.msra.mxu0 0.0
    %406 = vmatprep.subr.mxu0 0.0
    %407 = vmatpush1.msra.mxu0 0.0
    %408 = vmatprep.subr.mxu0 0.0
    %409 = vmatpush1.msra.mxu0 0.0
    %410 = vmatprep.subr.mxu0 0.0
    %411 = vmatpush1.msra.mxu0 0.0
    %412 = vmatprep.subr.mxu0 0.0
    %413 = vmatpush1.msra.mxu0 0.0
    %414 = vmatprep.subr.mxu0 0.0
    %415 = vmatpush1.msra.mxu0 0.0
    %416 = vmatprep.subr.mxu0 0.0
    %417 = vmatpush1.msra.mxu0 0.0
    %418 = vmatprep.subr.mxu0 0.0
    %419 = vmatpush1.msra.mxu0 0.0
    %420 = vmatprep.subr.mxu0 0.0
    %421 = vmatpush1.msra.mxu0 0.0
    %422 = vmatprep.subr.mxu0 0.0
    %423 = vmatpush1.msra.mxu0 0.0
    %424 = vmatprep.subr.mxu0 0.0
    %425 = vmatpush1.msra.mxu0 0.0
    %426 = vmatprep.subr.mxu0 0.0
    %427 = vmatpush1.msra.mxu0 0.0
    %428 = vmatprep.subr.mxu0 0.0
    %429 = vmatpush1.msra.mxu0 0.0
    %430 = vmatprep.subr.mxu0 0.0
    %431 = vmatpush1.msra.mxu0 0.0
    %432 = vmatprep.subr.mxu0 0.0
    %433 = vmatpush1.msra.mxu0 0.0
    %434 = vmatprep.subr.mxu0 0.0
    %435 = vmatpush1.msra.mxu0 0.0
    %436 = vmatprep.subr.mxu0 0.0
    %437 = vmatpush1.msra.mxu0 0.0
    %438 = vmatprep.subr.mxu0 0.0
    %439 = vmatpush1.msra.mxu0 0.0
    %440 = vmatprep.subr.mxu0 0.0
    %441 = vmatpush1.msra.mxu0 0.0
    %442 = vmatprep.mubr.f32.mxu0 0.0
    %443 = vmatmul.mubr.f32.gmra.mrb[0].mxu0 %v125
    %v444 = vpop.f32.mrb[0].mxu0
    %v445 = vadd.f32 0.0, %v444
    %v446 = vpop.f32.mrb[0].mxu0
    %447 = vmatprep.mubr.f32.mxu0 0.0
    %448 = vmatmul.mubr.f32.gmra.mrb[0].mxu0 %v128
    %v449 = vpop.f32.mrb[0].mxu0
    %v450 = vadd.f32 0.0, %v449
    %v451 = vpop.f32.mrb[0].mxu0
    %452 = vdwg.mxu0
    %v454 = vsel %vm293, %v367, 0
    %v457 = vsel %vm293, %v372, 0
    %459 = vmatprep.subr.mxu0 0.0
    %460 = vmatpush1.msra.mxu0 %v375
    %461 = vmatprep.subr.mxu0 0.0
    %462 = vmatpush1.msra.mxu0 0.0
    %463 = vmatprep.subr.mxu0 0.0
    %464 = vmatpush1.msra.mxu0 0.0
    %465 = vmatprep.subr.mxu0 0.0
    %466 = vmatpush1.msra.mxu0 0.0
    %467 = vmatprep.subr.mxu0 0.0
    %468 = vmatpush1.msra.mxu0 0.0
    %469 = vmatprep.subr.mxu0 0.0
    %470 = vmatpush1.msra.mxu0 0.0
    %471 = vmatprep.subr.mxu0 0.0
    %472 = vmatpush1.msra.mxu0 0.0
    %473 = vmatprep.subr.mxu0 0.0
    %474 = vmatpush1.msra.mxu0 0.0
    %475 = vmatprep.subr.mxu0 0.0
    %476 = vmatpush1.msra.mxu0 0.0
    %477 = vmatprep.subr.mxu0 0.0
    %478 = vmatpush1.msra.mxu0 0.0
    %479 = vmatprep.subr.mxu0 0.0
    %480 = vmatpush1.msra.mxu0 0.0
    %481 = vmatprep.subr.mxu0 0.0
    %482 = vmatpush1.msra.mxu0 0.0
    %483 = vmatprep.subr.mxu0 0.0
    %484 = vmatpush1.msra.mxu0 0.0
    %485 = vmatprep.subr.mxu0 0.0
    %486 = vmatpush1.msra.mxu0 0.0
    %487 = vmatprep.subr.mxu0 0.0
    %488 = vmatpush1.msra.mxu0 0.0
    %489 = vmatprep.subr.mxu0 0.0
    %490 = vmatpush1.msra.mxu0 0.0
    %491 = vmatprep.subr.mxu0 0.0
    %492 = vmatpush1.msra.mxu0 0.0
    %493 = vmatprep.subr.mxu0 0.0
    %494 = vmatpush1.msra.mxu0 0.0
    %495 = vmatprep.subr.mxu0 0.0
    %496 = vmatpush1.msra.mxu0 0.0
    %497 = vmatprep.subr.mxu0 0.0
    %498 = vmatpush1.msra.mxu0 0.0
    %499 = vmatprep.subr.mxu0 0.0
    %500 = vmatpush1.msra.mxu0 0.0
    %501 = vmatprep.subr.mxu0 0.0
    %502 = vmatpush1.msra.mxu0 0.0
    %503 = vmatprep.subr.mxu0 0.0
    %504 = vmatpush1.msra.mxu0 0.0
    %505 = vmatprep.subr.mxu0 0.0
    %506 = vmatpush1.msra.mxu0 0.0
    %507 = vmatprep.subr.mxu0 0.0
    %508 = vmatpush1.msra.mxu0 0.0
    %509 = vmatprep.subr.mxu0 0.0
    %510 = vmatpush1.msra.mxu0 0.0
    %511 = vmatprep.subr.mxu0 0.0
    %512 = vmatpush1.msra.mxu0 0.0
    %513 = vmatprep.subr.mxu0 0.0
    %514 = vmatpush1.msra.mxu0 0.0
    %515 = vmatprep.subr.mxu0 0.0
    %516 = vmatpush1.msra.mxu0 0.0
    %517 = vmatprep.subr.mxu0 0.0
    %518 = vmatpush1.msra.mxu0 0.0
    %519 = vmatprep.subr.mxu0 0.0
    %520 = vmatpush1.msra.mxu0 0.0
    %521 = vmatprep.subr.mxu0 0.0
    %522 = vmatpush1.msra.mxu0 0.0
    %523 = vmatprep.mubr.f32.mxu0 0.0
    %524 = vmatmul.mubr.f32.gmra.mrb[0].mxu0 %v454
    %v525 = vpop.f32.mrb[0].mxu0
    %v526 = vadd.f32 %v445, %v525
    %v527 = vpop.f32.mrb[0].mxu0
    %528 = vmatprep.mubr.f32.mxu0 0.0
    %529 = vmatmul.mubr.f32.gmra.mrb[0].mxu0 %v457
    %v530 = vpop.f32.mrb[0].mxu0
    %v531 = vadd.f32 %v450, %v530
    %v532 = vpop.f32.mrb[0].mxu0
    %533 = vdwg.mxu0
    %v534 = vld [vmem:[%s6 + $0x40] sm:$0x1]
    %v535 = vlaneseq
    %v536 = vshrl.u32 %v535, 7
    %v537 = vsub.s32 0, %v536
    %v538 = vrot.slane %v534, %v537
    %v539 = vadd.f32 %v526, %v538
    %v540 = vadd.f32 %v531, %v538
    %v541 = vadd.f32 %v291, %v539
    %v542 = vadd.f32 %v292, %v540
    %v544 = vsel %vm38, %v37, 0
    %546 = vmatprep.subr.mxu0 0.0
    %547 = vmatpush1.msra.mxu0 %v29
    %548 = vmatprep.subr.mxu0 0.0
    %549 = vmatpush1.msra.mxu0 %v30
    %550 = vmatprep.subr.mxu0 0.0
    %551 = vmatpush1.msra.mxu0 0.0
    %552 = vmatprep.subr.mxu0 0.0
    %553 = vmatpush1.msra.mxu0 0.0
    %554 = vmatprep.subr.mxu0 0.0
    %555 = vmatpush1.msra.mxu0 0.0
    %556 = vmatprep.subr.mxu0 0.0
    %557 = vmatpush1.msra.mxu0 0.0
    %558 = vmatprep.subr.mxu0 0.0
    %559 = vmatpush1.msra.mxu0 0.0
    %560 = vmatprep.subr.mxu0 0.0
    %561 = vmatpush1.msra.mxu0 0.0
    %562 = vmatprep.subr.mxu0 0.0
    %563 = vmatpush1.msra.mxu0 0.0
    %564 = vmatprep.subr.mxu0 0.0
    %565 = vmatpush1.msra.mxu0 0.0
    %566 = vmatprep.subr.mxu0 0.0
    %567 = vmatpush1.msra.mxu0 0.0
    %568 = vmatprep.subr.mxu0 0.0
    %569 = vmatpush1.msra.mxu0 0.0
    %570 = vmatprep.subr.mxu0 0.0
    %571 = vmatpush1.msra.mxu0 0.0
    %572 = vmatprep.subr.mxu0 0.0
    %573 = vmatpush1.msra.mxu0 0.0
    %574 = vmatprep.subr.mxu0 0.0
    %575 = vmatpush1.msra.mxu0 0.0
    %576 = vmatprep.subr.mxu0 0.0
    %577 = vmatpush1.msra.mxu0 0.0
    %578 = vmatprep.subr.mxu0 0.0
    %579 = vmatpush1.msra.mxu0 0.0
    %580 = vmatprep.subr.mxu0 0.0
    %581 = vmatpush1.msra.mxu0 0.0
    %582 = vmatprep.subr.mxu0 0.0
    %583 = vmatpush1.msra.mxu0 0.0
    %584 = vmatprep.subr.mxu0 0.0
    %585 = vmatpush1.msra.mxu0 0.0
    %586 = vmatprep.subr.mxu0 0.0
    %587 = vmatpush1.msra.mxu0 0.0
    %588 = vmatprep.subr.mxu0 0.0
    %589 = vmatpush1.msra.mxu0 0.0
    %590 = vmatprep.subr.mxu0 0.0
    %591 = vmatpush1.msra.mxu0 0.0
    %592 = vmatprep.subr.mxu0 0.0
    %593 = vmatpush1.msra.mxu0 0.0
    %594 = vmatprep.subr.mxu0 0.0
    %595 = vmatpush1.msra.mxu0 0.0
    %596 = vmatprep.subr.mxu0 0.0
    %597 = vmatpush1.msra.mxu0 0.0
    %598 = vmatprep.subr.mxu0 0.0
    %599 = vmatpush1.msra.mxu0 0.0
    %600 = vmatprep.subr.mxu0 0.0
    %601 = vmatpush1.msra.mxu0 0.0
    %602 = vmatprep.subr.mxu0 0.0
    %603 = vmatpush1.msra.mxu0 0.0
    %604 = vmatprep.subr.mxu0 0.0
    %605 = vmatpush1.msra.mxu0 0.0
    %606 = vmatprep.subr.mxu0 0.0
    %607 = vmatpush1.msra.mxu0 0.0
    %608 = vmatprep.subr.mxu0 0.0
    %609 = vmatpush1.msra.mxu0 0.0
    %610 = vmatprep.mubr.f32.mxu0 0.0
    %611 = vmatmul.mubr.f32.gmra.mrb[0].mxu0 %v544
    %v612 = vpop.f32.mrb[0].mxu0
    %v613 = vadd.f32 0.0, %v612
    %v614 = vpop.f32.mrb[0].mxu0
    %615 = vdwg.mxu0
    %v616 = vld [vmem:[%s6 + $0x48] sm:$0xff]
    %v617 = vld [vmem:[%s6 + $0x50] sm:$0xff]
    %v618 = vld [vmem:[%s6 + $0x58] sm:$0xff]
    %v620 = vsel %vm293, %v32, 0
    %622 = vmatprep.subr.mxu0 0.0
    %623 = vmatpush1.msra.mxu0 %v618
    %624 = vmatprep.subr.mxu0 0.0
    %625 = vmatpush1.msra.mxu0 0.0
    %626 = vmatprep.subr.mxu0 0.0
    %627 = vmatpush1.msra.mxu0 0.0
    %628 = vmatprep.subr.mxu0 0.0
    %629 = vmatpush1.msra.mxu0 0.0
    %630 = vmatprep.subr.mxu0 0.0
    %631 = vmatpush1.msra.mxu0 0.0
    %632 = vmatprep.subr.mxu0 0.0
    %633 = vmatpush1.msra.mxu0 0.0
    %634 = vmatprep.subr.mxu0 0.0
    %635 = vmatpush1.msra.mxu0 0.0
    %636 = vmatprep.subr.mxu0 0.0
    %637 = vmatpush1.msra.mxu0 0.0
    %638 = vmatprep.subr.mxu0 0.0
    %639 = vmatpush1.msra.mxu0 0.0
    %640 = vmatprep.subr.mxu0 0.0
    %641 = vmatpush1.msra.mxu0 0.0
    %642 = vmatprep.subr.mxu0 0.0
    %643 = vmatpush1.msra.mxu0 0.0
    %644 = vmatprep.subr.mxu0 0.0
    %645 = vmatpush1.msra.mxu0 0.0
    %646 = vmatprep.subr.mxu0 0.0
    %647 = vmatpush1.msra.mxu0 0.0
    %648 = vmatprep.subr.mxu0 0.0
    %649 = vmatpush1.msra.mxu0 0.0
    %650 = vmatprep.subr.mxu0 0.0
    %651 = vmatpush1.msra.mxu0 0.0
    %652 = vmatprep.subr.mxu0 0.0
    %653 = vmatpush1.msra.mxu0 0.0
    %654 = vmatprep.subr.mxu0 0.0
    %655 = vmatpush1.msra.mxu0 0.0
    %656 = vmatprep.subr.mxu0 0.0
    %657 = vmatpush1.msra.mxu0 0.0
    %658 = vmatprep.subr.mxu0 0.0
    %659 = vmatpush1.msra.mxu0 0.0
    %660 = vmatprep.subr.mxu0 0.0
    %661 = vmatpush1.msra.mxu0 0.0
    %662 = vmatprep.subr.mxu0 0.0
    %663 = vmatpush1.msra.mxu0 0.0
    %664 = vmatprep.subr.mxu0 0.0
    %665 = vmatpush1.msra.mxu0 0.0
    %666 = vmatprep.subr.mxu0 0.0
    %667 = vmatpush1.msra.mxu0 0.0
    %668 = vmatprep.subr.mxu0 0.0
    %669 = vmatpush1.msra.mxu0 0.0
    %670 = vmatprep.subr.mxu0 0.0
    %671 = vmatpush1.msra.mxu0 0.0
    %672 = vmatprep.subr.mxu0 0.0
    %673 = vmatpush1.msra.mxu0 0.0
    %674 = vmatprep.subr.mxu0 0.0
    %675 = vmatpush1.msra.mxu0 0.0
    %676 = vmatprep.subr.mxu0 0.0
    %677 = vmatpush1.msra.mxu0 0.0
    %678 = vmatprep.subr.mxu0 0.0
    %679 = vmatpush1.msra.mxu0 0.0
    %680 = vmatprep.subr.mxu0 0.0
    %681 = vmatpush1.msra.mxu0 0.0
    %682 = vmatprep.subr.mxu0 0.0
    %683 = vmatpush1.msra.mxu0 0.0
    %684 = vmatprep.subr.mxu0 0.0
    %685 = vmatpush1.msra.mxu0 0.0
    %686 = vmatprep.mubr.f32.mxu0 0.0
    %687 = vmatmul.mubr.f32.gmra.mrb[0].mxu0 %v620
    %v688 = vpop.f32.mrb[0].mxu0
    %v689 = vadd.f32 0.0, %v688
    %v690 = vpop.f32.mrb[0].mxu0
    %691 = vdwg.mxu0
    %v693 = vsel %vm38, %v613, 0
    %695 = vmatprep.subr.mxu0 0.0
    %696 = vmatpush1.msra.mxu0 %v616
    %697 = vmatprep.subr.mxu0 0.0
    %698 = vmatpush1.msra.mxu0 %v617
    %699 = vmatprep.subr.mxu0 0.0
    %700 = vmatpush1.msra.mxu0 0.0
    %701 = vmatprep.subr.mxu0 0.0
    %702 = vmatpush1.msra.mxu0 0.0
    %703 = vmatprep.subr.mxu0 0.0
    %704 = vmatpush1.msra.mxu0 0.0
    %705 = vmatprep.subr.mxu0 0.0
    %706 = vmatpush1.msra.mxu0 0.0
    %707 = vmatprep.subr.mxu0 0.0
    %708 = vmatpush1.msra.mxu0 0.0
    %709 = vmatprep.subr.mxu0 0.0
    %710 = vmatpush1.msra.mxu0 0.0
    %711 = vmatprep.subr.mxu0 0.0
    %712 = vmatpush1.msra.mxu0 0.0
    %713 = vmatprep.subr.mxu0 0.0
    %714 = vmatpush1.msra.mxu0 0.0
    %715 = vmatprep.subr.mxu0 0.0
    %716 = vmatpush1.msra.mxu0 0.0
    %717 = vmatprep.subr.mxu0 0.0
    %718 = vmatpush1.msra.mxu0 0.0
    %719 = vmatprep.subr.mxu0 0.0
    %720 = vmatpush1.msra.mxu0 0.0
    %721 = vmatprep.subr.mxu0 0.0
    %722 = vmatpush1.msra.mxu0 0.0
    %723 = vmatprep.subr.mxu0 0.0
    %724 = vmatpush1.msra.mxu0 0.0
    %725 = vmatprep.subr.mxu0 0.0
    %726 = vmatpush1.msra.mxu0 0.0
    %727 = vmatprep.subr.mxu0 0.0
    %728 = vmatpush1.msra.mxu0 0.0
    %729 = vmatprep.subr.mxu0 0.0
    %730 = vmatpush1.msra.mxu0 0.0
    %731 = vmatprep.subr.mxu0 0.0
    %732 = vmatpush1.msra.mxu0 0.0
    %733 = vmatprep.subr.mxu0 0.0
    %734 = vmatpush1.msra.mxu0 0.0
    %735 = vmatprep.subr.mxu0 0.0
    %736 = vmatpush1.msra.mxu0 0.0
    %737 = vmatprep.subr.mxu0 0.0
    %738 = vmatpush1.msra.mxu0 0.0
    %739 = vmatprep.subr.mxu0 0.0
    %740 = vmatpush1.msra.mxu0 0.0
    %741 = vmatprep.subr.mxu0 0.0
    %742 = vmatpush1.msra.mxu0 0.0
    %743 = vmatprep.subr.mxu0 0.0
    %744 = vmatpush1.msra.mxu0 0.0
    %745 = vmatprep.subr.mxu0 0.0
    %746 = vmatpush1.msra.mxu0 0.0
    %747 = vmatprep.subr.mxu0 0.0
    %748 = vmatpush1.msra.mxu0 0.0
    %749 = vmatprep.subr.mxu0 0.0
    %750 = vmatpush1.msra.mxu0 0.0
    %751 = vmatprep.subr.mxu0 0.0
    %752 = vmatpush1.msra.mxu0 0.0
    %753 = vmatprep.subr.mxu0 0.0
    %754 = vmatpush1.msra.mxu0 0.0
    %755 = vmatprep.subr.mxu0 0.0
    %756 = vmatpush1.msra.mxu0 0.0
    %757 = vmatprep.subr.mxu0 0.0
    %758 = vmatpush1.msra.mxu0 0.0
    %759 = vmatprep.mubr.f32.mxu0 0.0
    %760 = vmatmul.mubr.f32.gmra.mrb[0].mxu0 %v693
    %v761 = vpop.f32.mrb[0].mxu0
    %v762 = vadd.f32 %v689, %v761
    %v763 = vpop.f32.mrb[0].mxu0
    %764 = vdwg.mxu0
    %v765 = vld [vmem:[%s6 + $0x60] sm:$0x1]
    %v766 = vlaneseq
    %v767 = vshrl.u32 %v766, 7
    %v768 = vsub.s32 0, %v767
    %v769 = vrot.slane %v765, %v768
    %v770 = vadd.f32 %v762, %v769
    %v771 = vmax.f32 %v541, 0.0
    %v772 = vmax.f32 %v542, 0.0
    %v773 = vmax.f32 %v770, 0.0
    %774 = vmatprep.subr.mxu0 0.0
    %775 = vmatpush1.msra.mxu0 %v771
    %776 = vmatprep.subr.mxu0 0.0
    %777 = vmatpush1.msra.mxu0 %v772
    %778 = vmatprep.subr.mxu0 0.0
    %779 = vmatpush1.msra.mxu0 0.0
    %780 = vmatprep.subr.mxu0 0.0
    %781 = vmatpush1.msra.mxu0 0.0
    %782 = vmatprep.subr.mxu0 0.0
    %783 = vmatpush1.msra.mxu0 0.0
    %784 = vmatprep.subr.mxu0 0.0
    %785 = vmatpush1.msra.mxu0 0.0
    %786 = vmatprep.subr.mxu0 0.0
    %787 = vmatpush1.msra.mxu0 0.0
    %788 = vmatprep.subr.mxu0 0.0
    %789 = vmatpush1.msra.mxu0 0.0
    %790 = vmatprep.subr.mxu0 0.0
    %791 = vmatpush1.msra.mxu0 0.0
    %792 = vmatprep.subr.mxu0 0.0
    %793 = vmatpush1.msra.mxu0 0.0
    %794 = vmatprep.subr.mxu0 0.0
    %795 = vmatpush1.msra.mxu0 0.0
    %796 = vmatprep.subr.mxu0 0.0
    %797 = vmatpush1.msra.mxu0 0.0
    %798 = vmatprep.subr.mxu0 0.0
    %799 = vmatpush1.msra.mxu0 0.0
    %800 = vmatprep.subr.mxu0 0.0
    %801 = vmatpush1.msra.mxu0 0.0
    %802 = vmatprep.subr.mxu0 0.0
    %803 = vmatpush1.msra.mxu0 0.0
    %804 = vmatprep.subr.mxu0 0.0
    %805 = vmatpush1.msra.mxu0 0.0
    %806 = vmatprep.subr.mxu0 0.0
    %807 = vmatpush1.msra.mxu0 0.0
    %808 = vmatprep.subr.mxu0 0.0
    %809 = vmatpush1.msra.mxu0 0.0
    %810 = vmatprep.subr.mxu0 0.0
    %811 = vmatpush1.msra.mxu0 0.0
    %812 = vmatprep.subr.mxu0 0.0
    %813 = vmatpush1.msra.mxu0 0.0
    %814 = vmatprep.subr.mxu0 0.0
    %815 = vmatpush1.msra.mxu0 0.0
    %816 = vmatprep.subr.mxu0 0.0
    %817 = vmatpush1.msra.mxu0 0.0
    %818 = vmatprep.subr.mxu0 0.0
    %819 = vmatpush1.msra.mxu0 0.0
    %820 = vmatprep.subr.mxu0 0.0
    %821 = vmatpush1.msra.mxu0 0.0
    %822 = vmatprep.subr.mxu0 0.0
    %823 = vmatpush1.msra.mxu0 0.0
    %824 = vmatprep.subr.mxu0 0.0
    %825 = vmatpush1.msra.mxu0 0.0
    %826 = vmatprep.subr.mxu0 0.0
    %827 = vmatpush1.msra.mxu0 0.0
    %828 = vmatprep.subr.mxu0 0.0
    %829 = vmatpush1.msra.mxu0 0.0
    %830 = vmatprep.subr.mxu0 0.0
    %831 = vmatpush1.msra.mxu0 0.0
    %832 = vmatprep.subr.mxu0 0.0
    %833 = vmatpush1.msra.mxu0 0.0
    %834 = vmatprep.subr.mxu0 0.0
    %835 = vmatpush1.msra.mxu0 0.0
    %836 = vmatprep.subr.mxu0 0.0
    %837 = vmatpush1.msra.mxu0 0.0
    %838 = vmatprep.mubr.f32.mxu0 0.0
    %839 = vmatmul.mubr.f32.gmra.mrb[0].mxu0 %v40
    %v840 = vpop.f32.mrb[0].mxu0
    %v841 = vadd.f32 0.0, %v840
    %v842 = vpop.f32.mrb[0].mxu0
    %843 = vmatprep.mubr.f32.mxu0 0.0
    %844 = vmatmul.mubr.f32.gmra.mrb[0].mxu0 %v43
    %v845 = vpop.f32.mrb[0].mxu0
    %v846 = vadd.f32 0.0, %v845
    %v847 = vpop.f32.mrb[0].mxu0
    %848 = vdwg.mxu0
    %v849 = vld [vmem:[%s6 + $0x68] sm:$0xff]
    %v850 = vld [vmem:[%s6 + $0x70] sm:$0xff]
    %v851 = vld [vmem:[%s6 + $0x78] sm:$0xff]
    %v852 = vld [vmem:[%s6 + $0x80] sm:$0xff]
    %v853 = vld [vmem:[%s6 + $0x88] sm:$0xff]
    %v854 = vld [vmem:[%s6 + $0x90] sm:$0xff]
    %v855 = vld [vmem:[%s6 + $0x98] sm:$0xff]
    %v856 = vld [vmem:[%s6 + $0xa0] sm:$0xff]
    %vm857 = vcmask 261120
    %v859 = vsel %vm857, %v771, 0
    %v862 = vsel %vm857, %v772, 0
    %864 = vmatprep.subr.mxu0 0.0
    %865 = vmatpush1.msra.mxu0 %v853
    %866 = vmatprep.subr.mxu0 0.0
    %867 = vmatpush1.msra.mxu0 %v854
    %868 = vmatprep.subr.mxu0 0.0
    %869 = vmatpush1.msra.mxu0 %v855
    %870 = vmatprep.subr.mxu0 0.0
    %871 = vmatpush1.msra.mxu0 %v856
    %872 = vmatprep.subr.mxu0 0.0
    %873 = vmatpush1.msra.mxu0 0.0
    %874 = vmatprep.subr.mxu0 0.0
    %875 = vmatpush1.msra.mxu0 0.0
    %876 = vmatprep.subr.mxu0 0.0
    %877 = vmatpush1.msra.mxu0 0.0
    %878 = vmatprep.subr.mxu0 0.0
    %879 = vmatpush1.msra.mxu0 0.0
    %880 = vmatprep.subr.mxu0 0.0
    %881 = vmatpush1.msra.mxu0 0.0
    %882 = vmatprep.subr.mxu0 0.0
    %883 = vmatpush1.msra.mxu0 0.0
    %884 = vmatprep.subr.mxu0 0.0
    %885 = vmatpush1.msra.mxu0 0.0
    %886 = vmatprep.subr.mxu0 0.0
    %887 = vmatpush1.msra.mxu0 0.0
    %888 = vmatprep.subr.mxu0 0.0
    %889 = vmatpush1.msra.mxu0 0.0
    %890 = vmatprep.subr.mxu0 0.0
    %891 = vmatpush1.msra.mxu0 0.0
    %892 = vmatprep.subr.mxu0 0.0
    %893 = vmatpush1.msra.mxu0 0.0
    %894 = vmatprep.subr.mxu0 0.0
    %895 = vmatpush1.msra.mxu0 0.0
    %896 = vmatprep.subr.mxu0 0.0
    %897 = vmatpush1.msra.mxu0 0.0
    %898 = vmatprep.subr.mxu0 0.0
    %899 = vmatpush1.msra.mxu0 0.0
    %900 = vmatprep.subr.mxu0 0.0
    %901 = vmatpush1.msra.mxu0 0.0
    %902 = vmatprep.subr.mxu0 0.0
    %903 = vmatpush1.msra.mxu0 0.0
    %904 = vmatprep.subr.mxu0 0.0
    %905 = vmatpush1.msra.mxu0 0.0
    %906 = vmatprep.subr.mxu0 0.0
    %907 = vmatpush1.msra.mxu0 0.0
    %908 = vmatprep.subr.mxu0 0.0
    %909 = vmatpush1.msra.mxu0 0.0
    %910 = vmatprep.subr.mxu0 0.0
    %911 = vmatpush1.msra.mxu0 0.0
    %912 = vmatprep.subr.mxu0 0.0
    %913 = vmatpush1.msra.mxu0 0.0
    %914 = vmatprep.subr.mxu0 0.0
    %915 = vmatpush1.msra.mxu0 0.0
    %916 = vmatprep.subr.mxu0 0.0
    %917 = vmatpush1.msra.mxu0 0.0
    %918 = vmatprep.subr.mxu0 0.0
    %919 = vmatpush1.msra.mxu0 0.0
    %920 = vmatprep.subr.mxu0 0.0
    %921 = vmatpush1.msra.mxu0 0.0
    %922 = vmatprep.subr.mxu0 0.0
    %923 = vmatpush1.msra.mxu0 0.0
    %924 = vmatprep.subr.mxu0 0.0
    %925 = vmatpush1.msra.mxu0 0.0
    %926 = vmatprep.subr.mxu0 0.0
    %927 = vmatpush1.msra.mxu0 0.0
    %928 = vmatprep.mubr.f32.mxu0 0.0
    %929 = vmatmul.mubr.f32.gmra.mrb[0].mxu0 %v859
    %v930 = vpop.f32.mrb[0].mxu0
    %v931 = vadd.f32 0.0, %v930
    %v932 = vpop.f32.mrb[0].mxu0
    %933 = vmatprep.mubr.f32.mxu0 0.0
    %934 = vmatmul.mubr.f32.gmra.mrb[0].mxu0 %v862
    %v935 = vpop.f32.mrb[0].mxu0
    %v936 = vadd.f32 0.0, %v935
    %v937 = vpop.f32.mrb[0].mxu0
    %938 = vdwg.mxu0
    %v940 = vsel %vm857, %v841, 0
    %v943 = vsel %vm857, %v846, 0
    %945 = vmatprep.subr.mxu0 0.0
    %946 = vmatpush1.msra.mxu0 %v849
    %947 = vmatprep.subr.mxu0 0.0
    %948 = vmatpush1.msra.mxu0 %v850
    %949 = vmatprep.subr.mxu0 0.0
    %950 = vmatpush1.msra.mxu0 %v851
    %951 = vmatprep.subr.mxu0 0.0
    %952 = vmatpush1.msra.mxu0 %v852
    %953 = vmatprep.subr.mxu0 0.0
    %954 = vmatpush1.msra.mxu0 0.0
    %955 = vmatprep.subr.mxu0 0.0
    %956 = vmatpush1.msra.mxu0 0.0
    %957 = vmatprep.subr.mxu0 0.0
    %958 = vmatpush1.msra.mxu0 0.0
    %959 = vmatprep.subr.mxu0 0.0
    %960 = vmatpush1.msra.mxu0 0.0
    %961 = vmatprep.subr.mxu0 0.0
    %962 = vmatpush1.msra.mxu0 0.0
    %963 = vmatprep.subr.mxu0 0.0
    %964 = vmatpush1.msra.mxu0 0.0
    %965 = vmatprep.subr.mxu0 0.0
    %966 = vmatpush1.msra.mxu0 0.0
    %967 = vmatprep.subr.mxu0 0.0
    %968 = vmatpush1.msra.mxu0 0.0
    %969 = vmatprep.subr.mxu0 0.0
    %970 = vmatpush1.msra.mxu0 0.0
    %971 = vmatprep.subr.mxu0 0.0
    %972 = vmatpush1.msra.mxu0 0.0
    %973 = vmatprep.subr.mxu0 0.0
    %974 = vmatpush1.msra.mxu0 0.0
    %975 = vmatprep.subr.mxu0 0.0
    %976 = vmatpush1.msra.mxu0 0.0
    %977 = vmatprep.subr.mxu0 0.0
    %978 = vmatpush1.msra.mxu0 0.0
    %979 = vmatprep.subr.mxu0 0.0
    %980 = vmatpush1.msra.mxu0 0.0
    %981 = vmatprep.subr.mxu0 0.0
    %982 = vmatpush1.msra.mxu0 0.0
    %983 = vmatprep.subr.mxu0 0.0
    %984 = vmatpush1.msra.mxu0 0.0
    %985 = vmatprep.subr.mxu0 0.0
    %986 = vmatpush1.msra.mxu0 0.0
    %987 = vmatprep.subr.mxu0 0.0
    %988 = vmatpush1.msra.mxu0 0.0
    %989 = vmatprep.subr.mxu0 0.0
    %990 = vmatpush1.msra.mxu0 0.0
    %991 = vmatprep.subr.mxu0 0.0
    %992 = vmatpush1.msra.mxu0 0.0
    %993 = vmatprep.subr.mxu0 0.0
    %994 = vmatpush1.msra.mxu0 0.0
    %995 = vmatprep.subr.mxu0 0.0
    %996 = vmatpush1.msra.mxu0 0.0
    %997 = vmatprep.subr.mxu0 0.0
    %998 = vmatpush1.msra.mxu0 0.0
    %999 = vmatprep.subr.mxu0 0.0
    %1000 = vmatpush1.msra.mxu0 0.0
    %1001 = vmatprep.subr.mxu0 0.0
    %1002 = vmatpush1.msra.mxu0 0.0
    %1003 = vmatprep.subr.mxu0 0.0
    %1004 = vmatpush1.msra.mxu0 0.0
    %1005 = vmatprep.subr.mxu0 0.0
    %1006 = vmatpush1.msra.mxu0 0.0
    %1007 = vmatprep.subr.mxu0 0.0
    %1008 = vmatpush1.msra.mxu0 0.0
    %1009 = vmatprep.mubr.f32.mxu0 0.0
    %1010 = vmatmul.mubr.f32.gmra.mrb[0].mxu0 %v940
    %v1011 = vpop.f32.mrb[0].mxu0
    %v1012 = vadd.f32 %v931, %v1011
    %v1013 = vpop.f32.mrb[0].mxu0
    %1014 = vmatprep.mubr.f32.mxu0 0.0
    %1015 = vmatmul.mubr.f32.gmra.mrb[0].mxu0 %v943
    %v1016 = vpop.f32.mrb[0].mxu0
    %v1017 = vadd.f32 %v936, %v1016
    %v1018 = vpop.f32.mrb[0].mxu0
    %1019 = vdwg.mxu0
    %v1020 = vld [vmem:[%s6 + $0xa8] sm:$0x1]
    %v1021 = vlaneseq
    %v1022 = vshrl.u32 %v1021, 7
    %v1023 = vsub.s32 0, %v1022
    %v1024 = vrot.slane %v1020, %v1023
    %v1025 = vadd.f32 %v1012, %v1024
    %v1026 = vadd.f32 %v1017, %v1024
    %1027 = vmatprep.subr.mxu0 0.0
    %1028 = vmatpush1.msra.mxu0 %v773
    %1029 = vmatprep.subr.mxu0 0.0
    %1030 = vmatpush1.msra.mxu0 0.0
    %1031 = vmatprep.subr.mxu0 0.0
    %1032 = vmatpush1.msra.mxu0 0.0
    %1033 = vmatprep.subr.mxu0 0.0
    %1034 = vmatpush1.msra.mxu0 0.0
    %1035 = vmatprep.subr.mxu0 0.0
    %1036 = vmatpush1.msra.mxu0 0.0
    %1037 = vmatprep.subr.mxu0 0.0
    %1038 = vmatpush1.msra.mxu0 0.0
    %1039 = vmatprep.subr.mxu0 0.0
    %1040 = vmatpush1.msra.mxu0 0.0
    %1041 = vmatprep.subr.mxu0 0.0
    %1042 = vmatpush1.msra.mxu0 0.0
    %1043 = vmatprep.subr.mxu0 0.0
    %1044 = vmatpush1.msra.mxu0 0.0
    %1045 = vmatprep.subr.mxu0 0.0
    %1046 = vmatpush1.msra.mxu0 0.0
    %1047 = vmatprep.subr.mxu0 0.0
    %1048 = vmatpush1.msra.mxu0 0.0
    %1049 = vmatprep.subr.mxu0 0.0
    %1050 = vmatpush1.msra.mxu0 0.0
    %1051 = vmatprep.subr.mxu0 0.0
    %1052 = vmatpush1.msra.mxu0 0.0
    %1053 = vmatprep.subr.mxu0 0.0
    %1054 = vmatpush1.msra.mxu0 0.0
    %1055 = vmatprep.subr.mxu0 0.0
    %1056 = vmatpush1.msra.mxu0 0.0
    %1057 = vmatprep.subr.mxu0 0.0
    %1058 = vmatpush1.msra.mxu0 0.0
    %1059 = vmatprep.subr.mxu0 0.0
    %1060 = vmatpush1.msra.mxu0 0.0
    %1061 = vmatprep.subr.mxu0 0.0
    %1062 = vmatpush1.msra.mxu0 0.0
    %1063 = vmatprep.subr.mxu0 0.0
    %1064 = vmatpush1.msra.mxu0 0.0
    %1065 = vmatprep.subr.mxu0 0.0
    %1066 = vmatpush1.msra.mxu0 0.0
    %1067 = vmatprep.subr.mxu0 0.0
    %1068 = vmatpush1.msra.mxu0 0.0
    %1069 = vmatprep.subr.mxu0 0.0
    %1070 = vmatpush1.msra.mxu0 0.0
    %1071 = vmatprep.subr.mxu0 0.0
    %1072 = vmatpush1.msra.mxu0 0.0
    %1073 = vmatprep.subr.mxu0 0.0
    %1074 = vmatpush1.msra.mxu0 0.0
    %1075 = vmatprep.subr.mxu0 0.0
    %1076 = vmatpush1.msra.mxu0 0.0
    %1077 = vmatprep.subr.mxu0 0.0
    %1078 = vmatpush1.msra.mxu0 0.0
    %1079 = vmatprep.subr.mxu0 0.0
    %1080 = vmatpush1.msra.mxu0 0.0
    %1081 = vmatprep.subr.mxu0 0.0
    %1082 = vmatpush1.msra.mxu0 0.0
    %1083 = vmatprep.subr.mxu0 0.0
    %1084 = vmatpush1.msra.mxu0 0.0
    %1085 = vmatprep.subr.mxu0 0.0
    %1086 = vmatpush1.msra.mxu0 0.0
    %1087 = vmatprep.subr.mxu0 0.0
    %1088 = vmatpush1.msra.mxu0 0.0
    %1089 = vmatprep.subr.mxu0 0.0
    %1090 = vmatpush1.msra.mxu0 0.0
    %1091 = vmatprep.mubr.f32.mxu0 0.0
    %1092 = vmatmul.mubr.f32.gmra.mrb[0].mxu0 %v295
    %v1093 = vpop.f32.mrb[0].mxu0
    %v1094 = vadd.f32 0.0, %v1093
    %v1095 = vpop.f32.mrb[0].mxu0
    %1096 = vmatprep.mubr.f32.mxu0 0.0
    %1097 = vmatmul.mubr.f32.gmra.mrb[0].mxu0 %v298
    %v1098 = vpop.f32.mrb[0].mxu0
    %v1099 = vadd.f32 0.0, %v1098
    %v1100 = vpop.f32.mrb[0].mxu0
    %1101 = vdwg.mxu0
    %v1102 = vld [vmem:[%s6 + $0xb0] sm:$0xff]
    %v1103 = vld [vmem:[%s6 + $0xb8] sm:$0xff]
    %v1104 = vld [vmem:[%s6 + $0xc0] sm:$0xff]
    %v1105 = vld [vmem:[%s6 + $0xc8] sm:$0xff]
    %v1106 = vld [vmem:[%s6 + $0xd0] sm:$0xff]
    %v1107 = vld [vmem:[%s6 + $0xd8] sm:$0xff]
    %v1108 = vld [vmem:[%s6 + $0xe0] sm:$0xff]
    %v1109 = vld [vmem:[%s6 + $0xe8] sm:$0xff]
    %1110 = vmatprep.subr.mxu0 0.0
    %1111 = vmatpush1.msra.mxu0 %v1106
    %1112 = vmatprep.subr.mxu0 0.0
    %1113 = vmatpush1.msra.mxu0 %v1107
    %1114 = vmatprep.subr.mxu0 0.0
    %1115 = vmatpush1.msra.mxu0 %v1108
    %1116 = vmatprep.subr.mxu0 0.0
    %1117 = vmatpush1.msra.mxu0 %v1109
    %1118 = vmatprep.subr.mxu0 0.0
    %1119 = vmatpush1.msra.mxu0 0.0
    %1120 = vmatprep.subr.mxu0 0.0
    %1121 = vmatpush1.msra.mxu0 0.0
    %1122 = vmatprep.subr.mxu0 0.0
    %1123 = vmatpush1.msra.mxu0 0.0
    %1124 = vmatprep.subr.mxu0 0.0
    %1125 = vmatpush1.msra.mxu0 0.0
    %1126 = vmatprep.subr.mxu0 0.0
    %1127 = vmatpush1.msra.mxu0 0.0
    %1128 = vmatprep.subr.mxu0 0.0
    %1129 = vmatpush1.msra.mxu0 0.0
    %1130 = vmatprep.subr.mxu0 0.0
    %1131 = vmatpush1.msra.mxu0 0.0
    %1132 = vmatprep.subr.mxu0 0.0
    %1133 = vmatpush1.msra.mxu0 0.0
    %1134 = vmatprep.subr.mxu0 0.0
    %1135 = vmatpush1.msra.mxu0 0.0
    %1136 = vmatprep.subr.mxu0 0.0
    %1137 = vmatpush1.msra.mxu0 0.0
    %1138 = vmatprep.subr.mxu0 0.0
    %1139 = vmatpush1.msra.mxu0 0.0
    %1140 = vmatprep.subr.mxu0 0.0
    %1141 = vmatpush1.msra.mxu0 0.0
    %1142 = vmatprep.subr.mxu0 0.0
    %1143 = vmatpush1.msra.mxu0 0.0
    %1144 = vmatprep.subr.mxu0 0.0
    %1145 = vmatpush1.msra.mxu0 0.0
    %1146 = vmatprep.subr.mxu0 0.0
    %1147 = vmatpush1.msra.mxu0 0.0
    %1148 = vmatprep.subr.mxu0 0.0
    %1149 = vmatpush1.msra.mxu0 0.0
    %1150 = vmatprep.subr.mxu0 0.0
    %1151 = vmatpush1.msra.mxu0 0.0
    %1152 = vmatprep.subr.mxu0 0.0
    %1153 = vmatpush1.msra.mxu0 0.0
    %1154 = vmatprep.subr.mxu0 0.0
    %1155 = vmatpush1.msra.mxu0 0.0
    %1156 = vmatprep.subr.mxu0 0.0
    %1157 = vmatpush1.msra.mxu0 0.0
    %1158 = vmatprep.subr.mxu0 0.0
    %1159 = vmatpush1.msra.mxu0 0.0
    %1160 = vmatprep.subr.mxu0 0.0
    %1161 = vmatpush1.msra.mxu0 0.0
    %1162 = vmatprep.subr.mxu0 0.0
    %1163 = vmatpush1.msra.mxu0 0.0
    %1164 = vmatprep.subr.mxu0 0.0
    %1165 = vmatpush1.msra.mxu0 0.0
    %1166 = vmatprep.subr.mxu0 0.0
    %1167 = vmatpush1.msra.mxu0 0.0
    %1168 = vmatprep.subr.mxu0 0.0
    %1169 = vmatpush1.msra.mxu0 0.0
    %1170 = vmatprep.subr.mxu0 0.0
    %1171 = vmatpush1.msra.mxu0 0.0
    %1172 = vmatprep.subr.mxu0 0.0
    %1173 = vmatpush1.msra.mxu0 0.0
    %1174 = vmatprep.mubr.f32.mxu0 0.0
    %1175 = vmatmul.mubr.f32.gmra.mrb[0].mxu0 %v859
    %v1176 = vpop.f32.mrb[0].mxu0
    %v1177 = vadd.f32 0.0, %v1176
    %v1178 = vpop.f32.mrb[0].mxu0
    %1179 = vmatprep.mubr.f32.mxu0 0.0
    %1180 = vmatmul.mubr.f32.gmra.mrb[0].mxu0 %v862
    %v1181 = vpop.f32.mrb[0].mxu0
    %v1182 = vadd.f32 0.0, %v1181
    %v1183 = vpop.f32.mrb[0].mxu0
    %1184 = vdwg.mxu0
    %v1186 = vsel %vm857, %v1094, 0
    %v1189 = vsel %vm857, %v1099, 0
    %1191 = vmatprep.subr.mxu0 0.0
    %1192 = vmatpush1.msra.mxu0 %v1102
    %1193 = vmatprep.subr.mxu0 0.0
    %1194 = vmatpush1.msra.mxu0 %v1103
    %1195 = vmatprep.subr.mxu0 0.0
    %1196 = vmatpush1.msra.mxu0 %v1104
    %1197 = vmatprep.subr.mxu0 0.0
    %1198 = vmatpush1.msra.mxu0 %v1105
    %1199 = vmatprep.subr.mxu0 0.0
    %1200 = vmatpush1.msra.mxu0 0.0
    %1201 = vmatprep.subr.mxu0 0.0
    %1202 = vmatpush1.msra.mxu0 0.0
    %1203 = vmatprep.subr.mxu0 0.0
    %1204 = vmatpush1.msra.mxu0 0.0
    %1205 = vmatprep.subr.mxu0 0.0
    %1206 = vmatpush1.msra.mxu0 0.0
    %1207 = vmatprep.subr.mxu0 0.0
    %1208 = vmatpush1.msra.mxu0 0.0
    %1209 = vmatprep.subr.mxu0 0.0
    %1210 = vmatpush1.msra.mxu0 0.0
    %1211 = vmatprep.subr.mxu0 0.0
    %1212 = vmatpush1.msra.mxu0 0.0
    %1213 = vmatprep.subr.mxu0 0.0
    %1214 = vmatpush1.msra.mxu0 0.0
    %1215 = vmatprep.subr.mxu0 0.0
    %1216 = vmatpush1.msra.mxu0 0.0
    %1217 = vmatprep.subr.mxu0 0.0
    %1218 = vmatpush1.msra.mxu0 0.0
    %1219 = vmatprep.subr.mxu0 0.0
    %1220 = vmatpush1.msra.mxu0 0.0
    %1221 = vmatprep.subr.mxu0 0.0
    %1222 = vmatpush1.msra.mxu0 0.0
    %1223 = vmatprep.subr.mxu0 0.0
    %1224 = vmatpush1.msra.mxu0 0.0
    %1225 = vmatprep.subr.mxu0 0.0
    %1226 = vmatpush1.msra.mxu0 0.0
    %1227 = vmatprep.subr.mxu0 0.0
    %1228 = vmatpush1.msra.mxu0 0.0
    %1229 = vmatprep.subr.mxu0 0.0
    %1230 = vmatpush1.msra.mxu0 0.0
    %1231 = vmatprep.subr.mxu0 0.0
    %1232 = vmatpush1.msra.mxu0 0.0
    %1233 = vmatprep.subr.mxu0 0.0
    %1234 = vmatpush1.msra.mxu0 0.0
    %1235 = vmatprep.subr.mxu0 0.0
    %1236 = vmatpush1.msra.mxu0 0.0
    %1237 = vmatprep.subr.mxu0 0.0
    %1238 = vmatpush1.msra.mxu0 0.0
    %1239 = vmatprep.subr.mxu0 0.0
    %1240 = vmatpush1.msra.mxu0 0.0
    %1241 = vmatprep.subr.mxu0 0.0
    %1242 = vmatpush1.msra.mxu0 0.0
    %1243 = vmatprep.subr.mxu0 0.0
    %1244 = vmatpush1.msra.mxu0 0.0
    %1245 = vmatprep.subr.mxu0 0.0
    %1246 = vmatpush1.msra.mxu0 0.0
    %1247 = vmatprep.subr.mxu0 0.0
    %1248 = vmatpush1.msra.mxu0 0.0
    %1249 = vmatprep.subr.mxu0 0.0
    %1250 = vmatpush1.msra.mxu0 0.0
    %1251 = vmatprep.subr.mxu0 0.0
    %1252 = vmatpush1.msra.mxu0 0.0
    %1253 = vmatprep.subr.mxu0 0.0
    %1254 = vmatpush1.msra.mxu0 0.0
    %1255 = vmatprep.mubr.f32.mxu0 0.0
    %1256 = vmatmul.mubr.f32.gmra.mrb[0].mxu0 %v1186
    %v1257 = vpop.f32.mrb[0].mxu0
    %v1258 = vadd.f32 %v1177, %v1257
    %v1259 = vpop.f32.mrb[0].mxu0
    %1260 = vmatprep.mubr.f32.mxu0 0.0
    %1261 = vmatmul.mubr.f32.gmra.mrb[0].mxu0 %v1189
    %v1262 = vpop.f32.mrb[0].mxu0
    %v1263 = vadd.f32 %v1182, %v1262
    %v1264 = vpop.f32.mrb[0].mxu0
    %1265 = vdwg.mxu0
    %v1266 = vld [vmem:[%s6 + $0xf0] sm:$0x1]
    %v1267 = vlaneseq
    %v1268 = vshrl.u32 %v1267, 7
    %v1269 = vsub.s32 0, %v1268
    %v1270 = vrot.slane %v1266, %v1269
    %v1271 = vadd.f32 %v1258, %v1270
    %v1272 = vadd.f32 %v1263, %v1270
    %v1273 = vadd.f32 %v1025, %v1271
    %v1274 = vadd.f32 %v1026, %v1272
    %v1276 = vsel %vm857, %v1273, 0
    %v1279 = vsel %vm857, %v1274, 0
    %1281 = vmatprep.subr.mxu0 0.0
    %1282 = vmatpush1.xpose.msra.mxu0 %v1276
    %1283 = vmatprep.subr.mxu0 0.0
    %1284 = vmatpush1.xpose.msra.mxu0 %v1279
    %1285 = vmatprep.subr.mxu0 0.0
    %1286 = vmatpush1.xpose.msra.mxu0 0.0
    %1287 = vmatprep.subr.mxu0 0.0
    %1288 = vmatpush1.xpose.msra.mxu0 0.0
    %1289 = vmatprep.subr.mxu0 0.0
    %1290 = vmatpush1.xpose.msra.mxu0 0.0
    %1291 = vmatprep.subr.mxu0 0.0
    %1292 = vmatpush1.xpose.msra.mxu0 0.0
    %1293 = vmatprep.subr.mxu0 0.0
    %1294 = vmatpush1.xpose.msra.mxu0 0.0
    %1295 = vmatprep.subr.mxu0 0.0
    %1296 = vmatpush1.xpose.msra.mxu0 0.0
    %1297 = vmatprep.subr.mxu0 0.0
    %1298 = vmatpush1.xpose.msra.mxu0 0.0
    %1299 = vmatprep.subr.mxu0 0.0
    %1300 = vmatpush1.xpose.msra.mxu0 0.0
    %1301 = vmatprep.subr.mxu0 0.0
    %1302 = vmatpush1.xpose.msra.mxu0 0.0
    %1303 = vmatprep.subr.mxu0 0.0
    %1304 = vmatpush1.xpose.msra.mxu0 0.0
    %1305 = vmatprep.subr.mxu0 0.0
    %1306 = vmatpush1.xpose.msra.mxu0 0.0
    %1307 = vmatprep.subr.mxu0 0.0
    %1308 = vmatpush1.xpose.msra.mxu0 0.0
    %1309 = vmatprep.subr.mxu0 0.0
    %1310 = vmatpush1.xpose.msra.mxu0 0.0
    %1311 = vmatprep.subr.mxu0 0.0
    %1312 = vmatpush1.xpose.msra.mxu0 0.0
    %1313 = vmatprep.subr.mxu0 0.0
    %1314 = vmatpush1.xpose.msra.mxu0 0.0
    %1315 = vmatprep.subr.mxu0 0.0
    %1316 = vmatpush1.xpose.msra.mxu0 0.0
    %1317 = vmatprep.subr.mxu0 0.0
    %1318 = vmatpush1.xpose.msra.mxu0 0.0
    %1319 = vmatprep.subr.mxu0 0.0
    %1320 = vmatpush1.xpose.msra.mxu0 0.0
    %1321 = vmatprep.subr.mxu0 0.0
    %1322 = vmatpush1.xpose.msra.mxu0 0.0
    %1323 = vmatprep.subr.mxu0 0.0
    %1324 = vmatpush1.xpose.msra.mxu0 0.0
    %1325 = vmatprep.subr.mxu0 0.0
    %1326 = vmatpush1.xpose.msra.mxu0 0.0
    %1327 = vmatprep.subr.mxu0 0.0
    %1328 = vmatpush1.xpose.msra.mxu0 0.0
    %1329 = vmatprep.subr.mxu0 0.0
    %1330 = vmatpush1.xpose.msra.mxu0 0.0
    %1331 = vmatprep.subr.mxu0 0.0
    %1332 = vmatpush1.xpose.msra.mxu0 0.0
    %1333 = vmatprep.subr.mxu0 0.0
    %1334 = vmatpush1.xpose.msra.mxu0 0.0
    %1335 = vmatprep.subr.mxu0 0.0
    %1336 = vmatpush1.xpose.msra.mxu0 0.0
    %1337 = vmatprep.subr.mxu0 0.0
    %1338 = vmatpush1.xpose.msra.mxu0 0.0
    %1339 = vmatprep.subr.mxu0 0.0
    %1340 = vmatpush1.xpose.msra.mxu0 0.0
    %1341 = vmatprep.subr.mxu0 0.0
    %1342 = vmatpush1.xpose.msra.mxu0 0.0
    %1343 = vmatprep.subr.mxu0 0.0
    %1344 = vmatpush1.xpose.msra.mxu0 0.0
    %1345 = vmatprep.mubr.f32.mxu0 0.0
    %1346 = vmatmul.mubr.f32.gmra.mrb[0].mxu0 %v1276
    %v1347 = vpop.f32.mrb[0].mxu0
    %v1348 = vadd.f32 0.0, %v1347
    %v1349 = vpop.f32.mrb[0].mxu0
    %1350 = vmatprep.mubr.f32.mxu0 0.0
    %1351 = vmatmul.mubr.f32.gmra.mrb[0].mxu0 %v1279
    %v1352 = vpop.f32.mrb[0].mxu0
    %v1353 = vadd.f32 0.0, %v1352
    %v1354 = vpop.f32.mrb[0].mxu0
    %1355 = vdwg.mxu0
    %v1356 = vld [vmem:[%s0] sm:$0xf]
    %v1357 = vlaneseq
    %v1358 = vshrl.u32 %v1357, 7
    %v1359 = vadd.s32 %v1358, 8
    %v1360 = vlaneseq
    %v1361 = vshrl.u32 %v1360, 7
    %v1362 = vsub.s32 0, %v1361
    %v1363 = vrot.slane %v1356, %v1362
    %vm1364 = vcmp.eq.s32.totalorder %v1358, %v1363
    %vm1365 = vcmp.eq.s32.totalorder %v1359, %v1363
    %v1366 = vsel %vm1364, 1, 0
    %v1367 = vsel %vm1365, 1, 0
    %v1368 = vcvt.s32.f32 %v1366
    %v1369 = vcvt.s32.f32 %v1367
    %v1370 = vlaneseq
    %v1371 = vshrl.u32 %v1370, 7
    %v1372 = vsub.s32 1, %v1371
    %v1373 = vrot.slane %v1356, %v1372
    %vm1374 = vcmp.eq.s32.totalorder %v1358, %v1373
    %vm1375 = vcmp.eq.s32.totalorder %v1359, %v1373
    %v1376 = vsel %vm1374, 1, 0
    %v1377 = vsel %vm1375, 1, 0
    %v1378 = vcvt.s32.f32 %v1376
    %v1379 = vcvt.s32.f32 %v1377
    %v1381 = vsel %vm38, %v1348, 0
    %v1384 = vsel %vm38, %v1353, 0
    %1386 = vmatprep.subr.mxu0 0.0
    %1387 = vmatpush1.msra.mxu0 %v1378
    %1388 = vmatprep.subr.mxu0 0.0
    %1389 = vmatpush1.msra.mxu0 %v1379
    %1390 = vmatprep.subr.mxu0 0.0
    %1391 = vmatpush1.msra.mxu0 0.0
    %1392 = vmatprep.subr.mxu0 0.0
    %1393 = vmatpush1.msra.mxu0 0.0
    %1394 = vmatprep.subr.mxu0 0.0
    %1395 = vmatpush1.msra.mxu0 0.0
    %1396 = vmatprep.subr.mxu0 0.0
    %1397 = vmatpush1.msra.mxu0 0.0
    %1398 = vmatprep.subr.mxu0 0.0
    %1399 = vmatpush1.msra.mxu0 0.0
    %1400 = vmatprep.subr.mxu0 0.0
    %1401 = vmatpush1.msra.mxu0 0.0
    %1402 = vmatprep.subr.mxu0 0.0
    %1403 = vmatpush1.msra.mxu0 0.0
    %1404 = vmatprep.subr.mxu0 0.0
    %1405 = vmatpush1.msra.mxu0 0.0
    %1406 = vmatprep.subr.mxu0 0.0
    %1407 = vmatpush1.msra.mxu0 0.0
    %1408 = vmatprep.subr.mxu0 0.0
    %1409 = vmatpush1.msra.mxu0 0.0
    %1410 = vmatprep.subr.mxu0 0.0
    %1411 = vmatpush1.msra.mxu0 0.0
    %1412 = vmatprep.subr.mxu0 0.0
    %1413 = vmatpush1.msra.mxu0 0.0
    %1414 = vmatprep.subr.mxu0 0.0
    %1415 = vmatpush1.msra.mxu0 0.0
    %1416 = vmatprep.subr.mxu0 0.0
    %1417 = vmatpush1.msra.mxu0 0.0
    %1418 = vmatprep.subr.mxu0 0.0
    %1419 = vmatpush1.msra.mxu0 0.0
    %1420 = vmatprep.subr.mxu0 0.0
    %1421 = vmatpush1.msra.mxu0 0.0
    %1422 = vmatprep.subr.mxu0 0.0
    %1423 = vmatpush1.msra.mxu0 0.0
    %1424 = vmatprep.subr.mxu0 0.0
    %1425 = vmatpush1.msra.mxu0 0.0
    %1426 = vmatprep.subr.mxu0 0.0
    %1427 = vmatpush1.msra.mxu0 0.0
    %1428 = vmatprep.subr.mxu0 0.0
    %1429 = vmatpush1.msra.mxu0 0.0
    %1430 = vmatprep.subr.mxu0 0.0
    %1431 = vmatpush1.msra.mxu0 0.0
    %1432 = vmatprep.subr.mxu0 0.0
    %1433 = vmatpush1.msra.mxu0 0.0
    %1434 = vmatprep.subr.mxu0 0.0
    %1435 = vmatpush1.msra.mxu0 0.0
    %1436 = vmatprep.subr.mxu0 0.0
    %1437 = vmatpush1.msra.mxu0 0.0
    %1438 = vmatprep.subr.mxu0 0.0
    %1439 = vmatpush1.msra.mxu0 0.0
    %1440 = vmatprep.subr.mxu0 0.0
    %1441 = vmatpush1.msra.mxu0 0.0
    %1442 = vmatprep.subr.mxu0 0.0
    %1443 = vmatpush1.msra.mxu0 0.0
    %1444 = vmatprep.subr.mxu0 0.0
    %1445 = vmatpush1.msra.mxu0 0.0
    %1446 = vmatprep.subr.mxu0 0.0
    %1447 = vmatpush1.msra.mxu0 0.0
    %1448 = vmatprep.subr.mxu0 0.0
    %1449 = vmatpush1.msra.mxu0 0.0
    %1450 = vmatprep.mubr.f32.mxu0 0.0
    %1451 = vmatmul.mubr.f32.gmra.mrb[0].mxu0 %v1381
    %v1452 = vpop.f32.mrb[0].mxu0
    %v1453 = vadd.f32 0.0, %v1452
    %v1454 = vpop.f32.mrb[0].mxu0
    %1455 = vmatprep.mubr.f32.mxu0 0.0
    %1456 = vmatmul.mubr.f32.gmra.mrb[0].mxu0 %v1384
    %v1457 = vpop.f32.mrb[0].mxu0
    %v1458 = vadd.f32 0.0, %v1457
    %v1459 = vpop.f32.mrb[0].mxu0
    %1460 = vdwg.mxu0
    %v1461 = vmul.f32 %v1368, %v1453
    %v1462 = vmul.f32 %v1369, %v1458
    %vm1463 = vcmask 195584
    %v1464 = vsel %vm1463, %v1461, 0.0
    %v1465 = vsel %vm1463, %v1462, 0.0
    %v1466 = vadd.f32 %v1464, %v1465
    %v1467 = vrot.slane %v1466, 4
    %v1468 = vadd.f32 %v1466, %v1467
    %v1469 = vrot.slane %v1468, 2
    %v1470 = vadd.f32 %v1468, %v1469
    %v1471 = vrot.slane %v1470, 1
    %v1472 = vadd.f32 %v1470, %v1471
    %v1473 = vlaneseq
    %v1474 = vshrl.u32 %v1473, 7
    %v1475 = vsub.s32 2, %v1474
    %v1476 = vrot.slane %v1356, %v1475
    %vm1477 = vcmp.eq.s32.totalorder %v1358, %v1476
    %vm1478 = vcmp.eq.s32.totalorder %v1359, %v1476
    %v1479 = vsel %vm1477, 1, 0
    %v1480 = vsel %vm1478, 1, 0
    %v1481 = vcvt.s32.f32 %v1479
    %v1482 = vcvt.s32.f32 %v1480
    %v1483 = vlaneseq
    %v1484 = vshrl.u32 %v1483, 7
    %v1485 = vsub.s32 3, %v1484
    %v1486 = vrot.slane %v1356, %v1485
    %vm1487 = vcmp.eq.s32.totalorder %v1358, %v1486
    %vm1488 = vcmp.eq.s32.totalorder %v1359, %v1486
    %v1489 = vsel %vm1487, 1, 0
    %v1490 = vsel %vm1488, 1, 0
    %v1491 = vcvt.s32.f32 %v1489
    %v1492 = vcvt.s32.f32 %v1490
    %1493 = vmatprep.subr.mxu0 0.0
    %1494 = vmatpush1.msra.mxu0 %v1491
    %1495 = vmatprep.subr.mxu0 0.0
    %1496 = vmatpush1.msra.mxu0 %v1492
    %1497 = vmatprep.subr.mxu0 0.0
    %1498 = vmatpush1.msra.mxu0 0.0
    %1499 = vmatprep.subr.mxu0 0.0
    %1500 = vmatpush1.msra.mxu0 0.0
    %1501 = vmatprep.subr.mxu0 0.0
    %1502 = vmatpush1.msra.mxu0 0.0
    %1503 = vmatprep.subr.mxu0 0.0
    %1504 = vmatpush1.msra.mxu0 0.0
    %1505 = vmatprep.subr.mxu0 0.0
    %1506 = vmatpush1.msra.mxu0 0.0
    %1507 = vmatprep.subr.mxu0 0.0
    %1508 = vmatpush1.msra.mxu0 0.0
    %1509 = vmatprep.subr.mxu0 0.0
    %1510 = vmatpush1.msra.mxu0 0.0
    %1511 = vmatprep.subr.mxu0 0.0
    %1512 = vmatpush1.msra.mxu0 0.0
    %1513 = vmatprep.subr.mxu0 0.0
    %1514 = vmatpush1.msra.mxu0 0.0
    %1515 = vmatprep.subr.mxu0 0.0
    %1516 = vmatpush1.msra.mxu0 0.0
    %1517 = vmatprep.subr.mxu0 0.0
    %1518 = vmatpush1.msra.mxu0 0.0
    %1519 = vmatprep.subr.mxu0 0.0
    %1520 = vmatpush1.msra.mxu0 0.0
    %1521 = vmatprep.subr.mxu0 0.0
    %1522 = vmatpush1.msra.mxu0 0.0
    %1523 = vmatprep.subr.mxu0 0.0
    %1524 = vmatpush1.msra.mxu0 0.0
    %1525 = vmatprep.subr.mxu0 0.0
    %1526 = vmatpush1.msra.mxu0 0.0
    %1527 = vmatprep.subr.mxu0 0.0
    %1528 = vmatpush1.msra.mxu0 0.0
    %1529 = vmatprep.subr.mxu0 0.0
    %1530 = vmatpush1.msra.mxu0 0.0
    %1531 = vmatprep.subr.mxu0 0.0
    %1532 = vmatpush1.msra.mxu0 0.0
    %1533 = vmatprep.subr.mxu0 0.0
    %1534 = vmatpush1.msra.mxu0 0.0
    %1535 = vmatprep.subr.mxu0 0.0
    %1536 = vmatpush1.msra.mxu0 0.0
    %1537 = vmatprep.subr.mxu0 0.0
    %1538 = vmatpush1.msra.mxu0 0.0
    %1539 = vmatprep.subr.mxu0 0.0
    %1540 = vmatpush1.msra.mxu0 0.0
    %1541 = vmatprep.subr.mxu0 0.0
    %1542 = vmatpush1.msra.mxu0 0.0
    %1543 = vmatprep.subr.mxu0 0.0
    %1544 = vmatpush1.msra.mxu0 0.0
    %1545 = vmatprep.subr.mxu0 0.0
    %1546 = vmatpush1.msra.mxu0 0.0
    %1547 = vmatprep.subr.mxu0 0.0
    %1548 = vmatpush1.msra.mxu0 0.0
    %1549 = vmatprep.subr.mxu0 0.0
    %1550 = vmatpush1.msra.mxu0 0.0
    %1551 = vmatprep.subr.mxu0 0.0
    %1552 = vmatpush1.msra.mxu0 0.0
    %1553 = vmatprep.subr.mxu0 0.0
    %1554 = vmatpush1.msra.mxu0 0.0
    %1555 = vmatprep.subr.mxu0 0.0
    %1556 = vmatpush1.msra.mxu0 0.0
    %1557 = vmatprep.mubr.f32.mxu0 0.0
    %1558 = vmatmul.mubr.f32.gmra.mrb[0].mxu0 %v1381
    %v1559 = vpop.f32.mrb[0].mxu0
    %v1560 = vadd.f32 0.0, %v1559
    %v1561 = vpop.f32.mrb[0].mxu0
    %1562 = vmatprep.mubr.f32.mxu0 0.0
    %1563 = vmatmul.mubr.f32.gmra.mrb[0].mxu0 %v1384
    %v1564 = vpop.f32.mrb[0].mxu0
    %v1565 = vadd.f32 0.0, %v1564
    %v1566 = vpop.f32.mrb[0].mxu0
    %1567 = vdwg.mxu0
    %v1568 = vmul.f32 %v1481, %v1560
    %v1569 = vmul.f32 %v1482, %v1565
    %v1570 = vsel %vm1463, %v1568, 0.0
    %v1571 = vsel %vm1463, %v1569, 0.0
    %v1572 = vadd.f32 %v1570, %v1571
    %v1573 = vrot.slane %v1572, 4
    %v1574 = vadd.f32 %v1572, %v1573
    %v1575 = vrot.slane %v1574, 2
    %v1576 = vadd.f32 %v1574, %v1575
    %v1577 = vrot.slane %v1576, 1
    %v1578 = vadd.f32 %v1576, %v1577
    %vm1579 = vcmask 1040384
    %v1580 = vsel %vm1579, %v1472, %v1578
    %vm1581 = vcmask 189440
    %1582 = vst.msk [vmem:[#allocation2] sm:$0x3] %vm1581, %v1580
    // Predicated region
    $region30: #{tpu_custom_call.1} parent=1 // pred_check
      _
    $region31: #{tpu_custom_call.1} parent=1 // pred_check_branch
      %1584 = sbr.rel (0) target = $region33
    $region32: #{tpu_custom_call.1} parent=1 // pred_region
      %s1586 = ssub.s32 32, 32
      %1587 = vsyncadd [#allocation3], %s1586
      %s1589 = sshll.u32 [#allocation2], 4
      %s1590 = int_to_ptr.vmem [resolvable:$true] %s1589
      %1592 = dma.vmem_to_hbm [thread:$0]  %s1590, 32, %s7, [#allocation3]
    $region33: #{tpu_custom_call.1} parent=1 // pred_fallthru
      _
    // Predicated region
    $region34: #{tpu_custom_call.1} parent=1 // pred_check
      _
    $region35: #{tpu_custom_call.1} parent=1 // pred_check_branch
      %1594 = sbr.rel (0) target = $region37
    $region36: #{tpu_custom_call.1} parent=1 // pred_region
      %1595 = dma.done [#allocation3], 32
    $region37: #{tpu_custom_call.1} parent=1 // pred_fallthru
      _
    %1596 = vsyncpa [#allocation3], 1

</llo_original>
